<compile_context>
chip_gen: v5e
topology: v5e:2x2
jax: 0.10.0
libtpu: 0.0.40
codegen_flags: <defaults>
</compile_context>

<pallas_src>
import functools

import jax
import jax.numpy as jnp
from jax import lax
from jax.experimental import pallas as pl
from jax.experimental.pallas import tpu as pltpu

EPS = 1e-5


def _pick_row_chunk(cout):
    # Largest row tile (multiple of 8, <= 128) that evenly divides Cout, so the BN
    # epilogue's per-chunk live set stays well under the 64-vreg budget.
    for rc in (128, 120, 112, 104, 96, 88, 80, 72, 64, 56, 48, 40, 32, 24, 16, 8):
        if cout % rc == 0:
            return rc
    return cout


def _conv_bn_kernel(w_ref, x_ref, g_ref, b_ref, o_ref, *, inv_m, eps, row_chunk):
    # w_ref: [Cout, Cin] f32    x_ref: [Cin, M] f32  (M = N*H*W)
    # g_ref/b_ref: [Cout, 1] f32   o_ref: [Cout, M] f32
    #
    # Cast the shared matmul RHS once; it stays resident across all row chunks.
    xb = x_ref[...].astype(jnp.bfloat16)

    cout = w_ref.shape[0]
    n_chunks = cout // row_chunk

    # Statically unrolled row chunks: each chunk ([112, 196] f32 ~ 28 vregs) keeps the
    # matmul result and the three elementwise/reduce passes in registers.
    for c in range(n_chunks):
        r0 = c * row_chunk
        wb = w_ref[pl.ds(r0, row_chunk), :].astype(jnp.bfloat16)
        y = jnp.dot(wb, xb, preferred_element_type=jnp.float32)      # [rc, M] f32

        # One-pass BN statistics over the lane (N*H*W) axis, per output channel row.
        # NOTE: E[y^2] - E[y]^2 can cancel when |mean| >> std; acceptable at M=196/f32.
        s1 = jnp.sum(y, axis=-1, keepdims=True)
        s2 = jnp.sum(y * y, axis=-1, keepdims=True)
        mean = s1 * inv_m
        var = s2 * inv_m - mean * mean                               # biased variance

        scale = g_ref[pl.ds(r0, row_chunk), :] * lax.rsqrt(var + eps)
        bias = b_ref[pl.ds(r0, row_chunk), :] - mean * scale
        o_ref[pl.ds(r0, row_chunk), :] = (y * scale + bias).astype(o_ref.dtype)


def conv2d_1x1_batchnorm(x_nchw, conv_weight, gamma, beta, eps=EPS):
    """x_nchw: [N, Cin, H, W]; conv_weight: [Cout, Cin, 1, 1]; gamma/beta: [Cout]."""
    n, cin, h, w = x_nchw.shape
    cout = conv_weight.shape[0]
    m = n * h * w

    # [N, Cin, H, W] -> [Cin, M].  Free reshape when N == 1 (the module's case).
    if n == 1:
        x2d = x_nchw.reshape(cin, m)
    else:
        x2d = jnp.transpose(x_nchw, (1, 0, 2, 3)).reshape(cin, m)
    x2d = x2d.astype(jnp.float32)

    w2d = conv_weight.reshape(cout, cin).astype(jnp.float32)   # 1x1 kernel -> matrix (free)
    g2d = gamma.reshape(cout, 1).astype(jnp.float32)
    b2d = beta.reshape(cout, 1).astype(jnp.float32)

    row_chunk = _pick_row_chunk(cout)
    kernel = functools.partial(_conv_bn_kernel, inv_m=1.0 / float(m),
                               eps=float(eps), row_chunk=row_chunk)

    bytes_accessed = (x2d.size + w2d.size + g2d.size + b2d.size + cout * m) * 4

    out2d = pl.pallas_call(
        kernel,
        out_shape=jax.ShapeDtypeStruct((cout, m), jnp.float32),
        grid=(1,),
        in_specs=[
            pl.BlockSpec((cout, cin), lambda i: (0, 0)),   # W  [Cout, Cin]  (full array)
            pl.BlockSpec((cin, m), lambda i: (0, 0)),      # X  [Cin, M]     (full array)
            pl.BlockSpec((cout, 1), lambda i: (0, 0)),     # gamma
            pl.BlockSpec((cout, 1), lambda i: (0, 0)),     # beta
        ],
        out_specs=pl.BlockSpec((cout, m), lambda i: (0, 0)),
        compiler_params=pltpu.CompilerParams(
            dimension_semantics=("arbitrary",)),
        cost_estimate=pl.CostEstimate(
            flops=2 * m * cin * cout,
            transcendentals=0,
            bytes_accessed=bytes_accessed),
    )(w2d, x2d, g2d, b2d)

    if n == 1:
        return out2d.reshape(1, cout, h, w)                # free reshape back to NCHW
    return jnp.transpose(out2d.reshape(cout, n, h, w), (1, 0, 2, 3))


if __name__ == "__main__":
    key = jax.random.PRNGKey(0)
    k_x, k_w = jax.random.split(key)

    # Shapes implied by the module: input [1, 336, 14, 14], conv weight [336, 336, 1, 1]
    N, C, H, W = 1, 336, 14, 14
    x = jax.random.normal(k_x, (N, C, H, W), dtype=jnp.float32)
    conv_w = 0.05 * jax.random.normal(k_w, (C, C, 1, 1), dtype=jnp.float32)
    gamma = jnp.ones((C,), dtype=jnp.float32)   # BatchNorm2d default weight init
    beta = jnp.zeros((C,), dtype=jnp.float32)   # BatchNorm2d default bias init

    out = jax.jit(conv2d_1x1_batchnorm)(x, conv_w, gamma, beta)
    jax.block_until_ready(out)
    assert out.shape == (N, C, H, W), out.shape

    # Pure-JAX f32 reference (1x1 conv + training-mode BN with batch statistics).
    y_ref = jnp.einsum("oi,nihw->nohw", conv_w[:, :, 0, 0], x)
    mean = jnp.mean(y_ref, axis=(0, 2, 3), keepdims=True)
    var = jnp.mean((y_ref - mean) ** 2, axis=(0, 2, 3), keepdims=True)
    ref = ((y_ref - mean) * lax.rsqrt(var + EPS)
           * gamma.reshape(1, C, 1, 1) + beta.reshape(1, C, 1, 1))
    max_err = float(jnp.max(jnp.abs(out - ref)))
    assert max_err < 0.1, f"max abs error too large: {max_err}"

    print("KERNEL_OK")
</pallas_src>

<mosaic_0001>
module attributes {stable_mosaic.version = 11 : i64} {
  func.func @_conv_bn_kernel(%arg0: i32, %arg1: memref<336x336xf32, #tpu.memory_space<vmem>>, %arg2: memref<336x196xf32, #tpu.memory_space<vmem>>, %arg3: memref<336x1xf32, #tpu.memory_space<vmem>>, %arg4: memref<336x1xf32, #tpu.memory_space<vmem>>, %arg5: memref<336x196xf32, #tpu.memory_space<vmem>>) attributes {dimension_semantics = [#tpu.dimension_semantics<arbitrary>], iteration_bounds = array<i64: 1>, scalar_prefetch = 0 : i64, scratch_operands = 0 : i64, tpu.core_type = #tpu.core_type<tc>, window_params = [{pipeline_mode = #tpu.pipeline_mode<synchronous>, transform_indices = @transform_0, window_bounds = array<i64: 336, 336>}, {pipeline_mode = #tpu.pipeline_mode<synchronous>, transform_indices = @transform_1, window_bounds = array<i64: 336, 196>}, {pipeline_mode = #tpu.pipeline_mode<synchronous>, transform_indices = @transform_2, window_bounds = array<i64: 336, 1>}, {pipeline_mode = #tpu.pipeline_mode<synchronous>, transform_indices = @transform_3, window_bounds = array<i64: 336, 1>}, {pipeline_mode = #tpu.pipeline_mode<synchronous>, transform_indices = @transform_4, window_bounds = array<i64: 336, 196>}]} {
    %c0 = arith.constant 0 : index
    %c0_0 = arith.constant 0 : index
    %0 = vector.load %arg2[%c0, %c0_0] : memref<336x196xf32, #tpu.memory_space<vmem>>, vector<336x196xf32>
    %1 = arith.truncf %0 : vector<336x196xf32> to vector<336x196xbf16>
    %c0_1 = arith.constant 0 : index
    %c0_2 = arith.constant 0 : index
    %2 = vector.load %arg1[%c0_1, %c0_2] : memref<336x336xf32, #tpu.memory_space<vmem>>, vector<112x336xf32>
    %3 = arith.truncf %2 : vector<112x336xf32> to vector<112x336xbf16>
    %cst = arith.constant dense<0.000000e+00> : vector<112x196xf32>
    %4 = tpu.matmul %3, %1, %cst {dimension_numbers = #tpu.dot_dimension_numbers<[1], [0], [0], [1], [0, 0, 1, 1], [], []>} : vector<112x336xbf16>, vector<336x196xbf16>, vector<112x196xf32> -> vector<112x196xf32>
    %cst_3 = arith.constant dense<0.000000e+00> : vector<112xf32>
    %5 = vector.multi_reduction <add>, %4, %cst_3 [1] : vector<112x196xf32> to vector<112xf32>
    %6 = vector.shape_cast %5 : vector<112xf32> to vector<112x1xf32>
    %7 = arith.mulf %4, %4 : vector<112x196xf32>
    %cst_4 = arith.constant dense<0.000000e+00> : vector<112xf32>
    %8 = vector.multi_reduction <add>, %7, %cst_4 [1] : vector<112x196xf32> to vector<112xf32>
    %9 = vector.shape_cast %8 : vector<112xf32> to vector<112x1xf32>
    %cst_5 = arith.constant 0.00510204071 : f32
    %10 = vector.broadcast %cst_5 : f32 to vector<112x1xf32>
    %11 = arith.mulf %6, %10 : vector<112x1xf32>
    %cst_6 = arith.constant 0.00510204071 : f32
    %12 = vector.broadcast %cst_6 : f32 to vector<112x1xf32>
    %13 = arith.mulf %9, %12 : vector<112x1xf32>
    %14 = arith.mulf %11, %11 : vector<112x1xf32>
    %15 = arith.subf %13, %14 : vector<112x1xf32>
    %c0_7 = arith.constant 0 : index
    %c0_8 = arith.constant 0 : index
    %16 = vector.load %arg3[%c0_7, %c0_8] : memref<336x1xf32, #tpu.memory_space<vmem>>, vector<112x1xf32>
    %cst_9 = arith.constant 9.99999974E-6 : f32
    %17 = vector.broadcast %cst_9 : f32 to vector<112x1xf32>
    %18 = arith.addf %15, %17 : vector<112x1xf32>
    %19 = math.rsqrt %18 : vector<112x1xf32>
    %20 = arith.mulf %16, %19 : vector<112x1xf32>
    %c0_10 = arith.constant 0 : index
    %c0_11 = arith.constant 0 : index
    %21 = vector.load %arg4[%c0_10, %c0_11] : memref<336x1xf32, #tpu.memory_space<vmem>>, vector<112x1xf32>
    %22 = arith.mulf %11, %20 : vector<112x1xf32>
    %23 = arith.subf %21, %22 : vector<112x1xf32>
    %24 = vector.broadcast %20 : vector<112x1xf32> to vector<112x196xf32>
    %25 = arith.mulf %4, %24 : vector<112x196xf32>
    %26 = vector.broadcast %23 : vector<112x1xf32> to vector<112x196xf32>
    %27 = arith.addf %25, %26 : vector<112x196xf32>
    %c0_12 = arith.constant 0 : index
    %c0_13 = arith.constant 0 : index
    %28 = vector.load %arg5[%c0_12, %c0_13] : memref<336x196xf32, #tpu.memory_space<vmem>>, vector<112x196xf32>
    tpu.vector_store %arg5[%c0_12, %c0_13], %27 {strides = array<i32>} : memref<336x196xf32, #tpu.memory_space<vmem>>, vector<112x196xf32>,
    %c112 = arith.constant 112 : index
    %c0_14 = arith.constant 0 : index
    %29 = vector.load %arg1[%c112, %c0_14] : memref<336x336xf32, #tpu.memory_space<vmem>>, vector<112x336xf32>
    %30 = arith.truncf %29 : vector<112x336xf32> to vector<112x336xbf16>
    %cst_15 = arith.constant dense<0.000000e+00> : vector<112x196xf32>
    %31 = tpu.matmul %30, %1, %cst_15 {dimension_numbers = #tpu.dot_dimension_numbers<[1], [0], [0], [1], [0, 0, 1, 1], [], []>} : vector<112x336xbf16>, vector<336x196xbf16>, vector<112x196xf32> -> vector<112x196xf32>
    %cst_16 = arith.constant dense<0.000000e+00> : vector<112xf32>
    %32 = vector.multi_reduction <add>, %31, %cst_16 [1] : vector<112x196xf32> to vector<112xf32>
    %33 = vector.shape_cast %32 : vector<112xf32> to vector<112x1xf32>
    %34 = arith.mulf %31, %31 : vector<112x196xf32>
    %cst_17 = arith.constant dense<0.000000e+00> : vector<112xf32>
    %35 = vector.multi_reduction <add>, %34, %cst_17 [1] : vector<112x196xf32> to vector<112xf32>
    %36 = vector.shape_cast %35 : vector<112xf32> to vector<112x1xf32>
    %cst_18 = arith.constant 0.00510204071 : f32
    %37 = vector.broadcast %cst_18 : f32 to vector<112x1xf32>
    %38 = arith.mulf %33, %37 : vector<112x1xf32>
    %cst_19 = arith.constant 0.00510204071 : f32
    %39 = vector.broadcast %cst_19 : f32 to vector<112x1xf32>
    %40 = arith.mulf %36, %39 : vector<112x1xf32>
    %41 = arith.mulf %38, %38 : vector<112x1xf32>
    %42 = arith.subf %40, %41 : vector<112x1xf32>
    %c112_20 = arith.constant 112 : index
    %c0_21 = arith.constant 0 : index
    %43 = vector.load %arg3[%c112_20, %c0_21] : memref<336x1xf32, #tpu.memory_space<vmem>>, vector<112x1xf32>
    %cst_22 = arith.constant 9.99999974E-6 : f32
    %44 = vector.broadcast %cst_22 : f32 to vector<112x1xf32>
    %45 = arith.addf %42, %44 : vector<112x1xf32>
    %46 = math.rsqrt %45 : vector<112x1xf32>
    %47 = arith.mulf %43, %46 : vector<112x1xf32>
    %c112_23 = arith.constant 112 : index
    %c0_24 = arith.constant 0 : index
    %48 = vector.load %arg4[%c112_23, %c0_24] : memref<336x1xf32, #tpu.memory_space<vmem>>, vector<112x1xf32>
    %49 = arith.mulf %38, %47 : vector<112x1xf32>
    %50 = arith.subf %48, %49 : vector<112x1xf32>
    %51 = vector.broadcast %47 : vector<112x1xf32> to vector<112x196xf32>
    %52 = arith.mulf %31, %51 : vector<112x196xf32>
    %53 = vector.broadcast %50 : vector<112x1xf32> to vector<112x196xf32>
    %54 = arith.addf %52, %53 : vector<112x196xf32>
    %c112_25 = arith.constant 112 : index
    %c0_26 = arith.constant 0 : index
    %55 = vector.load %arg5[%c112_25, %c0_26] : memref<336x196xf32, #tpu.memory_space<vmem>>, vector<112x196xf32>
    tpu.vector_store %arg5[%c112_25, %c0_26], %54 {strides = array<i32>} : memref<336x196xf32, #tpu.memory_space<vmem>>, vector<112x196xf32>,
    %c224 = arith.constant 224 : index
    %c0_27 = arith.constant 0 : index
    %56 = vector.load %arg1[%c224, %c0_27] : memref<336x336xf32, #tpu.memory_space<vmem>>, vector<112x336xf32>
    %57 = arith.truncf %56 : vector<112x336xf32> to vector<112x336xbf16>
    %cst_28 = arith.constant dense<0.000000e+00> : vector<112x196xf32>
    %58 = tpu.matmul %57, %1, %cst_28 {dimension_numbers = #tpu.dot_dimension_numbers<[1], [0], [0], [1], [0, 0, 1, 1], [], []>} : vector<112x336xbf16>, vector<336x196xbf16>, vector<112x196xf32> -> vector<112x196xf32>
    %cst_29 = arith.constant dense<0.000000e+00> : vector<112xf32>
    %59 = vector.multi_reduction <add>, %58, %cst_29 [1] : vector<112x196xf32> to vector<112xf32>
    %60 = vector.shape_cast %59 : vector<112xf32> to vector<112x1xf32>
    %61 = arith.mulf %58, %58 : vector<112x196xf32>
    %cst_30 = arith.constant dense<0.000000e+00> : vector<112xf32>
    %62 = vector.multi_reduction <add>, %61, %cst_30 [1] : vector<112x196xf32> to vector<112xf32>
    %63 = vector.shape_cast %62 : vector<112xf32> to vector<112x1xf32>
    %cst_31 = arith.constant 0.00510204071 : f32
    %64 = vector.broadcast %cst_31 : f32 to vector<112x1xf32>
    %65 = arith.mulf %60, %64 : vector<112x1xf32>
    %cst_32 = arith.constant 0.00510204071 : f32
    %66 = vector.broadcast %cst_32 : f32 to vector<112x1xf32>
    %67 = arith.mulf %63, %66 : vector<112x1xf32>
    %68 = arith.mulf %65, %65 : vector<112x1xf32>
    %69 = arith.subf %67, %68 : vector<112x1xf32>
    %c224_33 = arith.constant 224 : index
    %c0_34 = arith.constant 0 : index
    %70 = vector.load %arg3[%c224_33, %c0_34] : memref<336x1xf32, #tpu.memory_space<vmem>>, vector<112x1xf32>
    %cst_35 = arith.constant 9.99999974E-6 : f32
    %71 = vector.broadcast %cst_35 : f32 to vector<112x1xf32>
    %72 = arith.addf %69, %71 : vector<112x1xf32>
    %73 = math.rsqrt %72 : vector<112x1xf32>
    %74 = arith.mulf %70, %73 : vector<112x1xf32>
    %c224_36 = arith.constant 224 : index
    %c0_37 = arith.constant 0 : index
    %75 = vector.load %arg4[%c224_36, %c0_37] : memref<336x1xf32, #tpu.memory_space<vmem>>, vector<112x1xf32>
    %76 = arith.mulf %65, %74 : vector<112x1xf32>
    %77 = arith.subf %75, %76 : vector<112x1xf32>
    %78 = vector.broadcast %74 : vector<112x1xf32> to vector<112x196xf32>
    %79 = arith.mulf %58, %78 : vector<112x196xf32>
    %80 = vector.broadcast %77 : vector<112x1xf32> to vector<112x196xf32>
    %81 = arith.addf %79, %80 : vector<112x196xf32>
    %c224_38 = arith.constant 224 : index
    %c0_39 = arith.constant 0 : index
    %82 = vector.load %arg5[%c224_38, %c0_39] : memref<336x196xf32, #tpu.memory_space<vmem>>, vector<112x196xf32>
    tpu.vector_store %arg5[%c224_38, %c0_39], %81 {strides = array<i32>} : memref<336x196xf32, #tpu.memory_space<vmem>>, vector<112x196xf32>,
    return
  }
  func.func @transform_0(%arg0: i32) -> (i32, i32) {
    %c0_i32 = arith.constant 0 : i32
    %c0_i32_0 = arith.constant 0 : i32
    %c0_i32_1 = arith.constant 0 : i32
    return %c0_i32, %c0_i32_0 : i32, i32
  }
  func.func @transform_1(%arg0: i32) -> (i32, i32) {
    %c0_i32 = arith.constant 0 : i32
    %c0_i32_0 = arith.constant 0 : i32
    %c0_i32_1 = arith.constant 0 : i32
    return %c0_i32, %c0_i32_0 : i32, i32
  }
  func.func @transform_2(%arg0: i32) -> (i32, i32) {
    %c0_i32 = arith.constant 0 : i32
    %c0_i32_0 = arith.constant 0 : i32
    %c0_i32_1 = arith.constant 0 : i32
    return %c0_i32, %c0_i32_0 : i32, i32
  }
  func.func @transform_3(%arg0: i32) -> (i32, i32) {
    %c0_i32 = arith.constant 0 : i32
    %c0_i32_0 = arith.constant 0 : i32
    %c0_i32_1 = arith.constant 0 : i32
    return %c0_i32, %c0_i32_0 : i32, i32
  }
  func.func @transform_4(%arg0: i32) -> (i32, i32) {
    %c0_i32 = arith.constant 0 : i32
    %c0_i32_0 = arith.constant 0 : i32
    %c0_i32_1 = arith.constant 0 : i32
    return %c0_i32, %c0_i32_0 : i32, i32
  }
}

</mosaic_0001>

<llo_original>
// kernel: conv2d_1x1_batchnorm.1
$region0: #{conv2d_1x1_batchnorm.1}
  #allocation0 [shape = 'u32[]', space=smem, size = 0x4, offset = 0x4, fixed_abs, tag = 'smem constant byte address 0x4 - core index']
  #allocation1 [shape = 'u32[72,128]{1,0:T(1,128)}', space=vmem, size = 0x9000, scoped, tag = 'internal scratch']
  %s0 = inlined_call_operand.vmem [shape: f32[336,336], index: 0, kind: input, shape index: {}]
  %s1 = inlined_call_operand.vmem [shape: f32[336,196], index: 1, kind: input, shape index: {}]
  %s2 = inlined_call_operand.vmem [shape: f32[336,1], index: 2, kind: input, shape index: {}]
  %s3 = inlined_call_operand.vmem [shape: f32[336,1], index: 3, kind: input, shape index: {}]
  %s4 = inlined_call_operand.vmem [shape: f32[336,196], index: 4, kind: output, shape index: {}]
  %s5 = sld [smem:[#allocation0]]
  $region26: #{conv2d_1x1_batchnorm.1} parent=0
    _
  %s7 = ssub.s32 1, %s5
  %s8 = scalar_select 0, %s7, %s5
  // Predicated region
  $region2: #{conv2d_1x1_batchnorm.1} parent=0 // pred_check
    _
  $region3: #{conv2d_1x1_batchnorm.1} parent=0 // pred_check_branch
    %10 = sbr.rel (0) target = $region5
  $region4: #{conv2d_1x1_batchnorm.1} parent=0 // pred_region
    _
  $region5: #{conv2d_1x1_batchnorm.1} parent=0 // pred_fallthru
    _
  // Predicated region
  $region6: #{conv2d_1x1_batchnorm.1} parent=0 // pred_check
    _
  $region7: #{conv2d_1x1_batchnorm.1} parent=0 // pred_check_branch
    %12 = sbr.rel (0) target = $region9
  $region8: #{conv2d_1x1_batchnorm.1} parent=0 // pred_region
    _
  $region9: #{conv2d_1x1_batchnorm.1} parent=0 // pred_fallthru
    _
  // Predicated region
  $region10: #{conv2d_1x1_batchnorm.1} parent=0 // pred_check
    _
  $region11: #{conv2d_1x1_batchnorm.1} parent=0 // pred_check_branch
    %14 = sbr.rel (0) target = $region13
  $region12: #{conv2d_1x1_batchnorm.1} parent=0 // pred_region
    _
  $region13: #{conv2d_1x1_batchnorm.1} parent=0 // pred_fallthru
    _
  // Predicated region
  $region14: #{conv2d_1x1_batchnorm.1} parent=0 // pred_check
    _
  $region15: #{conv2d_1x1_batchnorm.1} parent=0 // pred_check_branch
    %16 = sbr.rel (0) target = $region17
  $region16: #{conv2d_1x1_batchnorm.1} parent=0 // pred_region
    _
  $region17: #{conv2d_1x1_batchnorm.1} parent=0 // pred_fallthru
    _
  %v18 = vld [vmem:[%s1] sm:$0xff]
  %v19 = vld [vmem:[%s1 + $0x8] sm:$0xff]
  %v20 = vld [vmem:[%s1 + $0x10] sm:$0xff]
  %v21 = vld [vmem:[%s1 + $0x18] sm:$0xff]
  %v22 = vld [vmem:[%s1 + $0x20] sm:$0xff]
  %v23 = vld [vmem:[%s1 + $0x28] sm:$0xff]
  %v24 = vld [vmem:[%s1 + $0x30] sm:$0xff]
  %v25 = vld [vmem:[%s1 + $0x38] sm:$0xff]
  %v26 = vld [vmem:[%s1 + $0x40] sm:$0xff]
  %v27 = vld [vmem:[%s1 + $0x48] sm:$0xff]
  %v28 = vld [vmem:[%s1 + $0x50] sm:$0xff]
  %v29 = vld [vmem:[%s1 + $0x58] sm:$0xff]
  %v30 = vld [vmem:[%s1 + $0x60] sm:$0xff]
  %v31 = vld [vmem:[%s1 + $0x68] sm:$0xff]
  %v32 = vld [vmem:[%s1 + $0x70] sm:$0xff]
  %v33 = vld [vmem:[%s1 + $0x78] sm:$0xff]
  %v34 = vld [vmem:[%s1 + $0x80] sm:$0xff]
  %v35 = vld [vmem:[%s1 + $0x88] sm:$0xff]
  %v36 = vld [vmem:[%s1 + $0x90] sm:$0xff]
  %v37 = vld [vmem:[%s1 + $0x98] sm:$0xff]
  %v38 = vld [vmem:[%s1 + $0xa0] sm:$0xff]
  %v39 = vld [vmem:[%s1 + $0xa8] sm:$0xff]
  %v40 = vld [vmem:[%s1 + $0xb0] sm:$0xff]
  %v41 = vld [vmem:[%s1 + $0xb8] sm:$0xff]
  %v42 = vld [vmem:[%s1 + $0xc0] sm:$0xff]
  %v43 = vld [vmem:[%s1 + $0xc8] sm:$0xff]
  %v44 = vld [vmem:[%s1 + $0xd0] sm:$0xff]
  %v45 = vld [vmem:[%s1 + $0xd8] sm:$0xff]
  %v46 = vld [vmem:[%s1 + $0xe0] sm:$0xff]
  %v47 = vld [vmem:[%s1 + $0xe8] sm:$0xff]
  %v48 = vld [vmem:[%s1 + $0xf0] sm:$0xff]
  %v49 = vld [vmem:[%s1 + $0xf8] sm:$0xff]
  %v50 = vld [vmem:[%s1 + $0x100] sm:$0xff]
  %v51 = vld [vmem:[%s1 + $0x108] sm:$0xff]
  %v52 = vld [vmem:[%s1 + $0x110] sm:$0xff]
  %v53 = vld [vmem:[%s1 + $0x118] sm:$0xff]
  %v54 = vld [vmem:[%s1 + $0x120] sm:$0xff]
  %v55 = vld [vmem:[%s1 + $0x128] sm:$0xff]
  %v56 = vld [vmem:[%s1 + $0x130] sm:$0xff]
  %v57 = vld [vmem:[%s1 + $0x138] sm:$0xff]
  %v58 = vld [vmem:[%s1 + $0x140] sm:$0xff]
  %v59 = vld [vmem:[%s1 + $0x148] sm:$0xff]
  %v60 = vld [vmem:[%s1 + $0x150] sm:$0xff]
  %v61 = vld [vmem:[%s1 + $0x158] sm:$0xff]
  %v62 = vld [vmem:[%s1 + $0x160] sm:$0xff]
  %v63 = vld [vmem:[%s1 + $0x168] sm:$0xff]
  %v64 = vld [vmem:[%s1 + $0x170] sm:$0xff]
  %v65 = vld [vmem:[%s1 + $0x178] sm:$0xff]
  %v66 = vld [vmem:[%s1 + $0x180] sm:$0xff]
  %v67 = vld [vmem:[%s1 + $0x188] sm:$0xff]
  %v68 = vld [vmem:[%s1 + $0x190] sm:$0xff]
  %v69 = vld [vmem:[%s1 + $0x198] sm:$0xff]
  %v70 = vld [vmem:[%s1 + $0x1a0] sm:$0xff]
  %v71 = vld [vmem:[%s1 + $0x1a8] sm:$0xff]
  %v72 = vld [vmem:[%s1 + $0x1b0] sm:$0xff]
  %v73 = vld [vmem:[%s1 + $0x1b8] sm:$0xff]
  %v74 = vld [vmem:[%s1 + $0x1c0] sm:$0xff]
  %v75 = vld [vmem:[%s1 + $0x1c8] sm:$0xff]
  %v76 = vld [vmem:[%s1 + $0x1d0] sm:$0xff]
  %v77 = vld [vmem:[%s1 + $0x1d8] sm:$0xff]
  %v78 = vld [vmem:[%s1 + $0x1e0] sm:$0xff]
  %v79 = vld [vmem:[%s1 + $0x1e8] sm:$0xff]
  %v80 = vld [vmem:[%s1 + $0x1f0] sm:$0xff]
  %v81 = vld [vmem:[%s1 + $0x1f8] sm:$0xff]
  %v82 = vld [vmem:[%s1 + $0x200] sm:$0xff]
  %v83 = vld [vmem:[%s1 + $0x208] sm:$0xff]
  %v84 = vld [vmem:[%s1 + $0x210] sm:$0xff]
  %v85 = vld [vmem:[%s1 + $0x218] sm:$0xff]
  %v86 = vld [vmem:[%s1 + $0x220] sm:$0xff]
  %v87 = vld [vmem:[%s1 + $0x228] sm:$0xff]
  %v88 = vld [vmem:[%s1 + $0x230] sm:$0xff]
  %v89 = vld [vmem:[%s1 + $0x238] sm:$0xff]
  %v90 = vld [vmem:[%s1 + $0x240] sm:$0xff]
  %v91 = vld [vmem:[%s1 + $0x248] sm:$0xff]
  %v92 = vld [vmem:[%s1 + $0x250] sm:$0xff]
  %v93 = vld [vmem:[%s1 + $0x258] sm:$0xff]
  %v94 = vld [vmem:[%s1 + $0x260] sm:$0xff]
  %v95 = vld [vmem:[%s1 + $0x268] sm:$0xff]
  %v96 = vld [vmem:[%s1 + $0x270] sm:$0xff]
  %v97 = vld [vmem:[%s1 + $0x278] sm:$0xff]
  %v98 = vld [vmem:[%s1 + $0x280] sm:$0xff]
  %v99 = vld [vmem:[%s1 + $0x288] sm:$0xff]
  %v100 = vld [vmem:[%s1 + $0x290] sm:$0xff]
  %v101 = vld [vmem:[%s1 + $0x298] sm:$0xff]
  %v102 = vpack.c.bf16 %v20, %v18
  %v103 = vpack.c.bf16 %v21, %v19
  %v104 = vpack.c.bf16 %v24, %v22
  %v105 = vpack.c.bf16 %v25, %v23
  %v106 = vpack.c.bf16 %v28, %v26
  %v107 = vpack.c.bf16 %v29, %v27
  %v108 = vpack.c.bf16 %v32, %v30
  %v109 = vpack.c.bf16 %v33, %v31
  %v110 = vpack.c.bf16 %v36, %v34
  %v111 = vpack.c.bf16 %v37, %v35
  %v112 = vpack.c.bf16 %v40, %v38
  %v113 = vpack.c.bf16 %v41, %v39
  %v114 = vpack.c.bf16 %v44, %v42
  %v115 = vpack.c.bf16 %v45, %v43
  %v116 = vpack.c.bf16 %v48, %v46
  %v117 = vpack.c.bf16 %v49, %v47
  %v118 = vpack.c.bf16 %v52, %v50
  %v119 = vpack.c.bf16 %v53, %v51
  %v120 = vpack.c.bf16 %v56, %v54
  %v121 = vpack.c.bf16 %v57, %v55
  %v122 = vpack.c.bf16 %v60, %v58
  %v123 = vpack.c.bf16 %v61, %v59
  %v124 = vpack.c.bf16 %v64, %v62
  %v125 = vpack.c.bf16 %v65, %v63
  %v126 = vpack.c.bf16 %v68, %v66
  %v127 = vpack.c.bf16 %v69, %v67
  %v128 = vpack.c.bf16 %v72, %v70
  %v129 = vpack.c.bf16 %v73, %v71
  %v130 = vpack.c.bf16 %v76, %v74
  %v131 = vpack.c.bf16 %v77, %v75
  %v132 = vpack.c.bf16 %v80, %v78
  %v133 = vpack.c.bf16 %v81, %v79
  %v134 = vpack.c.bf16 %v84, %v82
  %v135 = vpack.c.bf16 %v85, %v83
  %v136 = vpack.c.bf16 %v88, %v86
  %v137 = vpack.c.bf16 %v89, %v87
  %v138 = vpack.c.bf16 %v92, %v90
  %v139 = vpack.c.bf16 %v93, %v91
  %v140 = vpack.c.bf16 %v96, %v94
  %v141 = vpack.c.bf16 %v97, %v95
  %v142 = vpack.c.bf16 %v100, %v98
  %v143 = vpack.c.bf16 %v101, %v99
  %v144 = vld [vmem:[%s0] sm:$0xff]
  %v145 = vld [vmem:[%s0 + $0x8] sm:$0xff]
  %v146 = vld [vmem:[%s0 + $0x10] sm:$0xff]
  %v147 = vld [vmem:[%s0 + $0x18] sm:$0xff]
  %v148 = vld [vmem:[%s0 + $0x20] sm:$0xff]
  %v149 = vld [vmem:[%s0 + $0x28] sm:$0xff]
  %v150 = vld [vmem:[%s0 + $0x30] sm:$0xff]
  %v151 = vld [vmem:[%s0 + $0x38] sm:$0xff]
  %v152 = vld [vmem:[%s0 + $0x40] sm:$0xff]
  %v153 = vld [vmem:[%s0 + $0x48] sm:$0xff]
  %v154 = vld [vmem:[%s0 + $0x50] sm:$0xff]
  %v155 = vld [vmem:[%s0 + $0x58] sm:$0xff]
  %v156 = vld [vmem:[%s0 + $0x60] sm:$0xff]
  %v157 = vld [vmem:[%s0 + $0x68] sm:$0xff]
  %v158 = vld [vmem:[%s0 + $0x70] sm:$0xff]
  %v159 = vld [vmem:[%s0 + $0x78] sm:$0xff]
  %v160 = vld [vmem:[%s0 + $0x80] sm:$0xff]
  %v161 = vld [vmem:[%s0 + $0x88] sm:$0xff]
  %v162 = vld [vmem:[%s0 + $0x90] sm:$0xff]
  %v163 = vld [vmem:[%s0 + $0x98] sm:$0xff]
  %v164 = vld [vmem:[%s0 + $0xa0] sm:$0xff]
  %v165 = vld [vmem:[%s0 + $0xa8] sm:$0xff]
  %v166 = vld [vmem:[%s0 + $0xb0] sm:$0xff]
  %v167 = vld [vmem:[%s0 + $0xb8] sm:$0xff]
  %v168 = vld [vmem:[%s0 + $0xc0] sm:$0xff]
  %v169 = vld [vmem:[%s0 + $0xc8] sm:$0xff]
  %v170 = vld [vmem:[%s0 + $0xd0] sm:$0xff]
  %v171 = vld [vmem:[%s0 + $0xd8] sm:$0xff]
  %v172 = vld [vmem:[%s0 + $0xe0] sm:$0xff]
  %v173 = vld [vmem:[%s0 + $0xe8] sm:$0xff]
  %v174 = vld [vmem:[%s0 + $0xf0] sm:$0xff]
  %v175 = vld [vmem:[%s0 + $0xf8] sm:$0xff]
  %v176 = vld [vmem:[%s0 + $0x100] sm:$0xff]
  %v177 = vld [vmem:[%s0 + $0x108] sm:$0xff]
  %v178 = vld [vmem:[%s0 + $0x110] sm:$0xff]
  %v179 = vld [vmem:[%s0 + $0x118] sm:$0xff]
  %v180 = vld [vmem:[%s0 + $0x120] sm:$0xff]
  %v181 = vld [vmem:[%s0 + $0x128] sm:$0xff]
  %v182 = vld [vmem:[%s0 + $0x130] sm:$0xff]
  %v183 = vld [vmem:[%s0 + $0x138] sm:$0xff]
  %v184 = vld [vmem:[%s0 + $0x140] sm:$0xff]
  %v185 = vld [vmem:[%s0 + $0x148] sm:$0xff]
  %v186 = vpack.c.bf16 %v147, %v144
  %v187 = vpack.c.bf16 %v148, %v145
  %v188 = vpack.c.bf16 %v149, %v146
  %v189 = vpack.c.bf16 %v153, %v150
  %v190 = vpack.c.bf16 %v154, %v151
  %v191 = vpack.c.bf16 %v155, %v152
  %v192 = vpack.c.bf16 %v159, %v156
  %v193 = vpack.c.bf16 %v160, %v157
  %v194 = vpack.c.bf16 %v161, %v158
  %v195 = vpack.c.bf16 %v165, %v162
  %v196 = vpack.c.bf16 %v166, %v163
  %v197 = vpack.c.bf16 %v167, %v164
  %v198 = vpack.c.bf16 %v171, %v168
  %v199 = vpack.c.bf16 %v172, %v169
  %v200 = vpack.c.bf16 %v173, %v170
  %v201 = vpack.c.bf16 %v177, %v174
  %v202 = vpack.c.bf16 %v178, %v175
  %v203 = vpack.c.bf16 %v179, %v176
  %v204 = vpack.c.bf16 %v183, %v180
  %v205 = vpack.c.bf16 %v184, %v181
  %v206 = vpack.c.bf16 %v185, %v182
  %vm207 = vcmask 654336
  %v209 = vsel %vm207, %v188, 0
  %v212 = vsel %vm207, %v191, 0
  %v215 = vsel %vm207, %v194, 0
  %v218 = vsel %vm207, %v197, 0
  %v221 = vsel %vm207, %v200, 0
  %v224 = vsel %vm207, %v203, 0
  %v227 = vsel %vm207, %v206, 0
  %229 = vmatpush.bf16.msra.mxu0 %v116
  %230 = vmatpush.bf16.msra.mxu0 %v114
  %231 = vmatpush.bf16.msra.mxu0 %v112
  %232 = vmatpush.bf16.msra.mxu0 %v110
  %233 = vmatpush.bf16.msra.mxu0 %v108
  %234 = vmatpush.bf16.msra.mxu0 %v106
  %235 = vmatpush.bf16.msra.mxu0 %v104
  %236 = vmatpush.bf16.msra.mxu0 %v102
  %237 = vmatmul.bf16.gmra.mxu0 %v186
  %v238 = vpop.f32.mrf.mxu0
  %v239 = vadd.f32 0.0, %v238
  %v240 = vpop.f32.mrf.mxu0
  %v241 = vadd.f32 0.0, %v240
  %242 = vmatmul.bf16.gmra.mxu0 %v189
  %v243 = vpop.f32.mrf.mxu0
  %v244 = vadd.f32 0.0, %v243
  %v245 = vpop.f32.mrf.mxu0
  %v246 = vadd.f32 0.0, %v245
  %247 = vmatmul.bf16.gmra.mxu0 %v192
  %v248 = vpop.f32.mrf.mxu0
  %v249 = vadd.f32 0.0, %v248
  %v250 = vpop.f32.mrf.mxu0
  %v251 = vadd.f32 0.0, %v250
  %252 = vmatmul.bf16.gmra.mxu0 %v195
  %v253 = vpop.f32.mrf.mxu0
  %v254 = vadd.f32 0.0, %v253
  %v255 = vpop.f32.mrf.mxu0
  %v256 = vadd.f32 0.0, %v255
  %257 = vmatmul.bf16.gmra.mxu0 %v198
  %v258 = vpop.f32.mrf.mxu0
  %v259 = vadd.f32 0.0, %v258
  %v260 = vpop.f32.mrf.mxu0
  %v261 = vadd.f32 0.0, %v260
  %262 = vmatmul.bf16.gmra.mxu0 %v201
  %v263 = vpop.f32.mrf.mxu0
  %v264 = vadd.f32 0.0, %v263
  %v265 = vpop.f32.mrf.mxu0
  %v266 = vadd.f32 0.0, %v265
  %267 = vmatmul.bf16.gmra.mxu0 %v204
  %v268 = vpop.f32.mrf.mxu0
  %v269 = vadd.f32 0.0, %v268
  %v270 = vpop.f32.mrf.mxu0
  %v271 = vadd.f32 0.0, %v270
  %272 = vdwg.mxu0
  %273 = vmatpush.bf16.msra.mxu0 %v132
  %274 = vmatpush.bf16.msra.mxu0 %v130
  %275 = vmatpush.bf16.msra.mxu0 %v128
  %276 = vmatpush.bf16.msra.mxu0 %v126
  %277 = vmatpush.bf16.msra.mxu0 %v124
  %278 = vmatpush.bf16.msra.mxu0 %v122
  %279 = vmatpush.bf16.msra.mxu0 %v120
  %280 = vmatpush.bf16.msra.mxu0 %v118
  %281 = vmatmul.bf16.gmra.mxu0 %v187
  %v282 = vpop.f32.mrf.mxu0
  %v283 = vadd.f32 %v239, %v282
  %v284 = vpop.f32.mrf.mxu0
  %v285 = vadd.f32 %v241, %v284
  %286 = vmatmul.bf16.gmra.mxu0 %v190
  %v287 = vpop.f32.mrf.mxu0
  %v288 = vadd.f32 %v244, %v287
  %v289 = vpop.f32.mrf.mxu0
  %v290 = vadd.f32 %v246, %v289
  %291 = vmatmul.bf16.gmra.mxu0 %v193
  %v292 = vpop.f32.mrf.mxu0
  %v293 = vadd.f32 %v249, %v292
  %v294 = vpop.f32.mrf.mxu0
  %v295 = vadd.f32 %v251, %v294
  %296 = vmatmul.bf16.gmra.mxu0 %v196
  %v297 = vpop.f32.mrf.mxu0
  %v298 = vadd.f32 %v254, %v297
  %v299 = vpop.f32.mrf.mxu0
  %v300 = vadd.f32 %v256, %v299
  %301 = vmatmul.bf16.gmra.mxu0 %v199
  %v302 = vpop.f32.mrf.mxu0
  %v303 = vadd.f32 %v259, %v302
  %v304 = vpop.f32.mrf.mxu0
  %v305 = vadd.f32 %v261, %v304
  %306 = vmatmul.bf16.gmra.mxu0 %v202
  %v307 = vpop.f32.mrf.mxu0
  %v308 = vadd.f32 %v264, %v307
  %v309 = vpop.f32.mrf.mxu0
  %v310 = vadd.f32 %v266, %v309
  %311 = vmatmul.bf16.gmra.mxu0 %v205
  %v312 = vpop.f32.mrf.mxu0
  %v313 = vadd.f32 %v269, %v312
  %v314 = vpop.f32.mrf.mxu0
  %v315 = vadd.f32 %v271, %v314
  %316 = vdwg.mxu0
  %317 = vmatpush.bf16.msra.mxu0 0
  %318 = vmatpush.bf16.msra.mxu0 0
  %319 = vmatpush.bf16.msra.mxu0 0
  %320 = vmatpush.bf16.msra.mxu0 %v142
  %321 = vmatpush.bf16.msra.mxu0 %v140
  %322 = vmatpush.bf16.msra.mxu0 %v138
  %323 = vmatpush.bf16.msra.mxu0 %v136
  %324 = vmatpush.bf16.msra.mxu0 %v134
  %325 = vmatmul.bf16.gmra.mxu0 %v209
  %v326 = vpop.f32.mrf.mxu0
  %v327 = vadd.f32 %v283, %v326
  %v328 = vpop.f32.mrf.mxu0
  %v329 = vadd.f32 %v285, %v328
  %330 = vmatmul.bf16.gmra.mxu0 %v212
  %v331 = vpop.f32.mrf.mxu0
  %v332 = vadd.f32 %v288, %v331
  %v333 = vpop.f32.mrf.mxu0
  %v334 = vadd.f32 %v290, %v333
  %335 = vmatmul.bf16.gmra.mxu0 %v215
  %v336 = vpop.f32.mrf.mxu0
  %v337 = vadd.f32 %v293, %v336
  %v338 = vpop.f32.mrf.mxu0
  %v339 = vadd.f32 %v295, %v338
  %340 = vmatmul.bf16.gmra.mxu0 %v218
  %v341 = vpop.f32.mrf.mxu0
  %v342 = vadd.f32 %v298, %v341
  %v343 = vpop.f32.mrf.mxu0
  %v344 = vadd.f32 %v300, %v343
  %345 = vmatmul.bf16.gmra.mxu0 %v221
  %v346 = vpop.f32.mrf.mxu0
  %v347 = vadd.f32 %v303, %v346
  %v348 = vpop.f32.mrf.mxu0
  %v349 = vadd.f32 %v305, %v348
  %350 = vmatmul.bf16.gmra.mxu0 %v224
  %v351 = vpop.f32.mrf.mxu0
  %v352 = vadd.f32 %v308, %v351
  %v353 = vpop.f32.mrf.mxu0
  %v354 = vadd.f32 %v310, %v353
  %355 = vmatmul.bf16.gmra.mxu0 %v227
  %v356 = vpop.f32.mrf.mxu0
  %v357 = vadd.f32 %v313, %v356
  %v358 = vpop.f32.mrf.mxu0
  %v359 = vadd.f32 %v315, %v358
  %360 = vdwg.mxu0
  %361 = vmatpush.bf16.msra.mxu0 %v117
  %362 = vmatpush.bf16.msra.mxu0 %v115
  %363 = vmatpush.bf16.msra.mxu0 %v113
  %364 = vmatpush.bf16.msra.mxu0 %v111
  %365 = vmatpush.bf16.msra.mxu0 %v109
  %366 = vmatpush.bf16.msra.mxu0 %v107
  %367 = vmatpush.bf16.msra.mxu0 %v105
  %368 = vmatpush.bf16.msra.mxu0 %v103
  %369 = vmatmul.bf16.gmra.mxu0 %v186
  %v370 = vpop.f32.mrf.mxu0
  %v371 = vadd.f32 0.0, %v370
  %v372 = vpop.f32.mrf.mxu0
  %v373 = vadd.f32 0.0, %v372
  %374 = vmatmul.bf16.gmra.mxu0 %v189
  %v375 = vpop.f32.mrf.mxu0
  %v376 = vadd.f32 0.0, %v375
  %v377 = vpop.f32.mrf.mxu0
  %v378 = vadd.f32 0.0, %v377
  %379 = vmatmul.bf16.gmra.mxu0 %v192
  %v380 = vpop.f32.mrf.mxu0
  %v381 = vadd.f32 0.0, %v380
  %v382 = vpop.f32.mrf.mxu0
  %v383 = vadd.f32 0.0, %v382
  %384 = vmatmul.bf16.gmra.mxu0 %v195
  %v385 = vpop.f32.mrf.mxu0
  %v386 = vadd.f32 0.0, %v385
  %v387 = vpop.f32.mrf.mxu0
  %v388 = vadd.f32 0.0, %v387
  %389 = vmatmul.bf16.gmra.mxu0 %v198
  %v390 = vpop.f32.mrf.mxu0
  %v391 = vadd.f32 0.0, %v390
  %v392 = vpop.f32.mrf.mxu0
  %v393 = vadd.f32 0.0, %v392
  %394 = vmatmul.bf16.gmra.mxu0 %v201
  %v395 = vpop.f32.mrf.mxu0
  %v396 = vadd.f32 0.0, %v395
  %v397 = vpop.f32.mrf.mxu0
  %v398 = vadd.f32 0.0, %v397
  %399 = vmatmul.bf16.gmra.mxu0 %v204
  %v400 = vpop.f32.mrf.mxu0
  %v401 = vadd.f32 0.0, %v400
  %v402 = vpop.f32.mrf.mxu0
  %v403 = vadd.f32 0.0, %v402
  %404 = vdwg.mxu0
  %405 = vmatpush.bf16.msra.mxu0 %v133
  %406 = vmatpush.bf16.msra.mxu0 %v131
  %407 = vmatpush.bf16.msra.mxu0 %v129
  %408 = vmatpush.bf16.msra.mxu0 %v127
  %409 = vmatpush.bf16.msra.mxu0 %v125
  %410 = vmatpush.bf16.msra.mxu0 %v123
  %411 = vmatpush.bf16.msra.mxu0 %v121
  %412 = vmatpush.bf16.msra.mxu0 %v119
  %413 = vmatmul.bf16.gmra.mxu0 %v187
  %v414 = vpop.f32.mrf.mxu0
  %v415 = vadd.f32 %v371, %v414
  %v416 = vpop.f32.mrf.mxu0
  %v417 = vadd.f32 %v373, %v416
  %418 = vmatmul.bf16.gmra.mxu0 %v190
  %v419 = vpop.f32.mrf.mxu0
  %v420 = vadd.f32 %v376, %v419
  %v421 = vpop.f32.mrf.mxu0
  %v422 = vadd.f32 %v378, %v421
  %423 = vmatmul.bf16.gmra.mxu0 %v193
  %v424 = vpop.f32.mrf.mxu0
  %v425 = vadd.f32 %v381, %v424
  %v426 = vpop.f32.mrf.mxu0
  %v427 = vadd.f32 %v383, %v426
  %428 = vmatmul.bf16.gmra.mxu0 %v196
  %v429 = vpop.f32.mrf.mxu0
  %v430 = vadd.f32 %v386, %v429
  %v431 = vpop.f32.mrf.mxu0
  %v432 = vadd.f32 %v388, %v431
  %433 = vmatmul.bf16.gmra.mxu0 %v199
  %v434 = vpop.f32.mrf.mxu0
  %v435 = vadd.f32 %v391, %v434
  %v436 = vpop.f32.mrf.mxu0
  %v437 = vadd.f32 %v393, %v436
  %438 = vmatmul.bf16.gmra.mxu0 %v202
  %v439 = vpop.f32.mrf.mxu0
  %v440 = vadd.f32 %v396, %v439
  %v441 = vpop.f32.mrf.mxu0
  %v442 = vadd.f32 %v398, %v441
  %443 = vmatmul.bf16.gmra.mxu0 %v205
  %v444 = vpop.f32.mrf.mxu0
  %v445 = vadd.f32 %v401, %v444
  %v446 = vpop.f32.mrf.mxu0
  %v447 = vadd.f32 %v403, %v446
  %448 = vdwg.mxu0
  %449 = vmatpush.bf16.msra.mxu0 0
  %450 = vmatpush.bf16.msra.mxu0 0
  %451 = vmatpush.bf16.msra.mxu0 0
  %452 = vmatpush.bf16.msra.mxu0 %v143
  %453 = vmatpush.bf16.msra.mxu0 %v141
  %454 = vmatpush.bf16.msra.mxu0 %v139
  %455 = vmatpush.bf16.msra.mxu0 %v137
  %456 = vmatpush.bf16.msra.mxu0 %v135
  %457 = vmatmul.bf16.gmra.mxu0 %v209
  %v458 = vpop.f32.mrf.mxu0
  %v459 = vadd.f32 %v415, %v458
  %v460 = vpop.f32.mrf.mxu0
  %v461 = vadd.f32 %v417, %v460
  %462 = vmatmul.bf16.gmra.mxu0 %v212
  %v463 = vpop.f32.mrf.mxu0
  %v464 = vadd.f32 %v420, %v463
  %v465 = vpop.f32.mrf.mxu0
  %v466 = vadd.f32 %v422, %v465
  %467 = vmatmul.bf16.gmra.mxu0 %v215
  %v468 = vpop.f32.mrf.mxu0
  %v469 = vadd.f32 %v425, %v468
  %v470 = vpop.f32.mrf.mxu0
  %v471 = vadd.f32 %v427, %v470
  %472 = vmatmul.bf16.gmra.mxu0 %v218
  %v473 = vpop.f32.mrf.mxu0
  %v474 = vadd.f32 %v430, %v473
  %v475 = vpop.f32.mrf.mxu0
  %v476 = vadd.f32 %v432, %v475
  %477 = vmatmul.bf16.gmra.mxu0 %v221
  %v478 = vpop.f32.mrf.mxu0
  %v479 = vadd.f32 %v435, %v478
  %v480 = vpop.f32.mrf.mxu0
  %v481 = vadd.f32 %v437, %v480
  %482 = vmatmul.bf16.gmra.mxu0 %v224
  %v483 = vpop.f32.mrf.mxu0
  %v484 = vadd.f32 %v440, %v483
  %v485 = vpop.f32.mrf.mxu0
  %v486 = vadd.f32 %v442, %v485
  %487 = vmatmul.bf16.gmra.mxu0 %v227
  %v488 = vpop.f32.mrf.mxu0
  %v489 = vadd.f32 %v445, %v488
  %v490 = vpop.f32.mrf.mxu0
  %v491 = vadd.f32 %v447, %v490
  %492 = vdwg.mxu0
  %vm493 = vcmask 556032
  %v494 = vsel %vm493, %v459, 0.0
  %v495 = vadd.f32 %v327, %v494
  %496 = vadd.xlane.f32.xlu0 %v495
  %v497 = vpop.xlane.xlu0 %496
  %v498 = vsel %vm493, %v461, 0.0
  %v499 = vadd.f32 %v329, %v498
  %500 = vadd.xlane.f32.xlu0 %v499
  %v501 = vpop.xlane.xlu0 %500
  %v502 = vsel %vm493, %v464, 0.0
  %v503 = vadd.f32 %v332, %v502
  %504 = vadd.xlane.f32.xlu0 %v503
  %v505 = vpop.xlane.xlu0 %504
  %v506 = vsel %vm493, %v466, 0.0
  %v507 = vadd.f32 %v334, %v506
  %508 = vadd.xlane.f32.xlu0 %v507
  %v509 = vpop.xlane.xlu0 %508
  %v510 = vsel %vm493, %v469, 0.0
  %v511 = vadd.f32 %v337, %v510
  %512 = vadd.xlane.f32.xlu0 %v511
  %v513 = vpop.xlane.xlu0 %512
  %v514 = vsel %vm493, %v471, 0.0
  %v515 = vadd.f32 %v339, %v514
  %516 = vadd.xlane.f32.xlu0 %v515
  %v517 = vpop.xlane.xlu0 %516
  %v518 = vsel %vm493, %v474, 0.0
  %v519 = vadd.f32 %v342, %v518
  %520 = vadd.xlane.f32.xlu0 %v519
  %v521 = vpop.xlane.xlu0 %520
  %v522 = vsel %vm493, %v476, 0.0
  %v523 = vadd.f32 %v344, %v522
  %524 = vadd.xlane.f32.xlu0 %v523
  %v525 = vpop.xlane.xlu0 %524
  %v526 = vsel %vm493, %v479, 0.0
  %v527 = vadd.f32 %v347, %v526
  %528 = vadd.xlane.f32.xlu0 %v527
  %v529 = vpop.xlane.xlu0 %528
  %v530 = vsel %vm493, %v481, 0.0
  %v531 = vadd.f32 %v349, %v530
  %532 = vadd.xlane.f32.xlu0 %v531
  %v533 = vpop.xlane.xlu0 %532
  %v534 = vsel %vm493, %v484, 0.0
  %v535 = vadd.f32 %v352, %v534
  %536 = vadd.xlane.f32.xlu0 %v535
  %v537 = vpop.xlane.xlu0 %536
  %v538 = vsel %vm493, %v486, 0.0
  %v539 = vadd.f32 %v354, %v538
  %540 = vadd.xlane.f32.xlu0 %v539
  %v541 = vpop.xlane.xlu0 %540
  %v542 = vsel %vm493, %v489, 0.0
  %v543 = vadd.f32 %v357, %v542
  %544 = vadd.xlane.f32.xlu0 %v543
  %v545 = vpop.xlane.xlu0 %544
  %v546 = vsel %vm493, %v491, 0.0
  %v547 = vadd.f32 %v359, %v546
  %548 = vadd.xlane.f32.xlu0 %v547
  %v549 = vpop.xlane.xlu0 %548
  %v550 = vmul.f32 %v327, %v327
  %v551 = vmul.f32 %v459, %v459
  %v552 = vmul.f32 %v329, %v329
  %v553 = vmul.f32 %v461, %v461
  %v554 = vmul.f32 %v332, %v332
  %v555 = vmul.f32 %v464, %v464
  %v556 = vmul.f32 %v334, %v334
  %v557 = vmul.f32 %v466, %v466
  %v558 = vmul.f32 %v337, %v337
  %v559 = vmul.f32 %v469, %v469
  %v560 = vmul.f32 %v339, %v339
  %v561 = vmul.f32 %v471, %v471
  %v562 = vmul.f32 %v342, %v342
  %v563 = vmul.f32 %v474, %v474
  %v564 = vmul.f32 %v344, %v344
  %v565 = vmul.f32 %v476, %v476
  %v566 = vmul.f32 %v347, %v347
  %v567 = vmul.f32 %v479, %v479
  %v568 = vmul.f32 %v349, %v349
  %v569 = vmul.f32 %v481, %v481
  %v570 = vmul.f32 %v352, %v352
  %v571 = vmul.f32 %v484, %v484
  %v572 = vmul.f32 %v354, %v354
  %v573 = vmul.f32 %v486, %v486
  %v574 = vmul.f32 %v357, %v357
  %v575 = vmul.f32 %v489, %v489
  %v576 = vmul.f32 %v359, %v359
  %v577 = vmul.f32 %v491, %v491
  %v578 = vsel %vm493, %v551, 0.0
  %v579 = vadd.f32 %v550, %v578
  %580 = vadd.xlane.f32.xlu0 %v579
  %v581 = vpop.xlane.xlu0 %580
  %v582 = vsel %vm493, %v553, 0.0
  %v583 = vadd.f32 %v552, %v582
  %584 = vadd.xlane.f32.xlu0 %v583
  %v585 = vpop.xlane.xlu0 %584
  %v586 = vsel %vm493, %v555, 0.0
  %v587 = vadd.f32 %v554, %v586
  %588 = vadd.xlane.f32.xlu0 %v587
  %v589 = vpop.xlane.xlu0 %588
  %v590 = vsel %vm493, %v557, 0.0
  %v591 = vadd.f32 %v556, %v590
  %592 = vadd.xlane.f32.xlu0 %v591
  %v593 = vpop.xlane.xlu0 %592
  %v594 = vsel %vm493, %v559, 0.0
  %v595 = vadd.f32 %v558, %v594
  %596 = vadd.xlane.f32.xlu0 %v595
  %v597 = vpop.xlane.xlu0 %596
  %v598 = vsel %vm493, %v561, 0.0
  %v599 = vadd.f32 %v560, %v598
  %600 = vadd.xlane.f32.xlu0 %v599
  %v601 = vpop.xlane.xlu0 %600
  %v602 = vsel %vm493, %v563, 0.0
  %v603 = vadd.f32 %v562, %v602
  %604 = vadd.xlane.f32.xlu0 %v603
  %v605 = vpop.xlane.xlu0 %604
  %v606 = vsel %vm493, %v565, 0.0
  %v607 = vadd.f32 %v564, %v606
  %608 = vadd.xlane.f32.xlu0 %v607
  %v609 = vpop.xlane.xlu0 %608
  %v610 = vsel %vm493, %v567, 0.0
  %v611 = vadd.f32 %v566, %v610
  %612 = vadd.xlane.f32.xlu0 %v611
  %v613 = vpop.xlane.xlu0 %612
  %v614 = vsel %vm493, %v569, 0.0
  %v615 = vadd.f32 %v568, %v614
  %616 = vadd.xlane.f32.xlu0 %v615
  %v617 = vpop.xlane.xlu0 %616
  %v618 = vsel %vm493, %v571, 0.0
  %v619 = vadd.f32 %v570, %v618
  %620 = vadd.xlane.f32.xlu0 %v619
  %v621 = vpop.xlane.xlu0 %620
  %v622 = vsel %vm493, %v573, 0.0
  %v623 = vadd.f32 %v572, %v622
  %624 = vadd.xlane.f32.xlu0 %v623
  %v625 = vpop.xlane.xlu0 %624
  %v626 = vsel %vm493, %v575, 0.0
  %v627 = vadd.f32 %v574, %v626
  %628 = vadd.xlane.f32.xlu0 %v627
  %v629 = vpop.xlane.xlu0 %628
  %v630 = vsel %vm493, %v577, 0.0
  %v631 = vadd.f32 %v576, %v630
  %632 = vadd.xlane.f32.xlu0 %v631
  %v633 = vpop.xlane.xlu0 %632
  %v634 = vmul.f32 %v497, 0.0051020407
  %v635 = vmul.f32 %v501, 0.0051020407
  %v636 = vmul.f32 %v505, 0.0051020407
  %v637 = vmul.f32 %v509, 0.0051020407
  %v638 = vmul.f32 %v513, 0.0051020407
  %v639 = vmul.f32 %v517, 0.0051020407
  %v640 = vmul.f32 %v521, 0.0051020407
  %v641 = vmul.f32 %v525, 0.0051020407
  %v642 = vmul.f32 %v529, 0.0051020407
  %v643 = vmul.f32 %v533, 0.0051020407
  %v644 = vmul.f32 %v537, 0.0051020407
  %v645 = vmul.f32 %v541, 0.0051020407
  %v646 = vmul.f32 %v545, 0.0051020407
  %v647 = vmul.f32 %v549, 0.0051020407
  %v648 = vmul.f32 %v581, 0.0051020407
  %v649 = vmul.f32 %v585, 0.0051020407
  %v650 = vmul.f32 %v589, 0.0051020407
  %v651 = vmul.f32 %v593, 0.0051020407
  %v652 = vmul.f32 %v597, 0.0051020407
  %v653 = vmul.f32 %v601, 0.0051020407
  %v654 = vmul.f32 %v605, 0.0051020407
  %v655 = vmul.f32 %v609, 0.0051020407
  %v656 = vmul.f32 %v613, 0.0051020407
  %v657 = vmul.f32 %v617, 0.0051020407
  %v658 = vmul.f32 %v621, 0.0051020407
  %v659 = vmul.f32 %v625, 0.0051020407
  %v660 = vmul.f32 %v629, 0.0051020407
  %v661 = vmul.f32 %v633, 0.0051020407
  %v662 = vmul.f32 %v634, %v634
  %v663 = vmul.f32 %v635, %v635
  %v664 = vmul.f32 %v636, %v636
  %v665 = vmul.f32 %v637, %v637
  %v666 = vmul.f32 %v638, %v638
  %v667 = vmul.f32 %v639, %v639
  %v668 = vmul.f32 %v640, %v640
  %v669 = vmul.f32 %v641, %v641
  %v670 = vmul.f32 %v642, %v642
  %v671 = vmul.f32 %v643, %v643
  %v672 = vmul.f32 %v644, %v644
  %v673 = vmul.f32 %v645, %v645
  %v674 = vmul.f32 %v646, %v646
  %v675 = vmul.f32 %v647, %v647
  %v676 = vsub.f32 %v648, %v662
  %v677 = vsub.f32 %v649, %v663
  %v678 = vsub.f32 %v650, %v664
  %v679 = vsub.f32 %v651, %v665
  %v680 = vsub.f32 %v652, %v666
  %v681 = vsub.f32 %v653, %v667
  %v682 = vsub.f32 %v654, %v668
  %v683 = vsub.f32 %v655, %v669
  %v684 = vsub.f32 %v656, %v670
  %v685 = vsub.f32 %v657, %v671
  %v686 = vsub.f32 %v658, %v672
  %v687 = vsub.f32 %v659, %v673
  %v688 = vsub.f32 %v660, %v674
  %v689 = vsub.f32 %v661, %v675
  %v690 = vld [vmem:[%s2] sm:$0xff]
  %v691 = vld [vmem:[%s2 + $0x8] sm:$0xff]
  %v692 = vld [vmem:[%s2 + $0x10] sm:$0xff]
  %v693 = vld [vmem:[%s2 + $0x18] sm:$0xff]
  %v694 = vld [vmem:[%s2 + $0x20] sm:$0xff]
  %v695 = vld [vmem:[%s2 + $0x28] sm:$0xff]
  %v696 = vld [vmem:[%s2 + $0x30] sm:$0xff]
  %v697 = vld [vmem:[%s2 + $0x38] sm:$0xff]
  %v698 = vld [vmem:[%s2 + $0x40] sm:$0xff]
  %v699 = vld [vmem:[%s2 + $0x48] sm:$0xff]
  %v700 = vld [vmem:[%s2 + $0x50] sm:$0xff]
  %v701 = vld [vmem:[%s2 + $0x58] sm:$0xff]
  %v702 = vld [vmem:[%s2 + $0x60] sm:$0xff]
  %v703 = vld [vmem:[%s2 + $0x68] sm:$0xff]
  %v704 = vadd.f32 %v676, 1e-05
  %v705 = vadd.f32 %v677, 1e-05
  %v706 = vadd.f32 %v678, 1e-05
  %v707 = vadd.f32 %v679, 1e-05
  %v708 = vadd.f32 %v680, 1e-05
  %v709 = vadd.f32 %v681, 1e-05
  %v710 = vadd.f32 %v682, 1e-05
  %v711 = vadd.f32 %v683, 1e-05
  %v712 = vadd.f32 %v684, 1e-05
  %v713 = vadd.f32 %v685, 1e-05
  %v714 = vadd.f32 %v686, 1e-05
  %v715 = vadd.f32 %v687, 1e-05
  %v716 = vadd.f32 %v688, 1e-05
  %v717 = vadd.f32 %v689, 1e-05
  %v718 = vrsqrt.pop %v704
  %v719 = vmul.f32 %v718, %v704
  %v720 = vmul.f32 %v719, %v718
  %v721 = vmul.f32 0.5, %v720
  %v722 = vsub.f32 1.5, %v721
  %v723 = vmul.f32 %v718, %v722
  %vm724 = vweird.f32 %v704
  %vm725 = vweird.f32 %v718
  %vm726 = vmor %vm724, %vm725
  %v727 = vsel %vm726, %v718, %v723
  %v728 = vrsqrt.pop %v705
  %v729 = vmul.f32 %v728, %v705
  %v730 = vmul.f32 %v729, %v728
  %v731 = vmul.f32 0.5, %v730
  %v732 = vsub.f32 1.5, %v731
  %v733 = vmul.f32 %v728, %v732
  %vm734 = vweird.f32 %v705
  %vm735 = vweird.f32 %v728
  %vm736 = vmor %vm734, %vm735
  %v737 = vsel %vm736, %v728, %v733
  %v738 = vrsqrt.pop %v706
  %v739 = vmul.f32 %v738, %v706
  %v740 = vmul.f32 %v739, %v738
  %v741 = vmul.f32 0.5, %v740
  %v742 = vsub.f32 1.5, %v741
  %v743 = vmul.f32 %v738, %v742
  %vm744 = vweird.f32 %v706
  %vm745 = vweird.f32 %v738
  %vm746 = vmor %vm744, %vm745
  %v747 = vsel %vm746, %v738, %v743
  %v748 = vrsqrt.pop %v707
  %v749 = vmul.f32 %v748, %v707
  %v750 = vmul.f32 %v749, %v748
  %v751 = vmul.f32 0.5, %v750
  %v752 = vsub.f32 1.5, %v751
  %v753 = vmul.f32 %v748, %v752
  %vm754 = vweird.f32 %v707
  %vm755 = vweird.f32 %v748
  %vm756 = vmor %vm754, %vm755
  %v757 = vsel %vm756, %v748, %v753
  %v758 = vrsqrt.pop %v708
  %v759 = vmul.f32 %v758, %v708
  %v760 = vmul.f32 %v759, %v758
  %v761 = vmul.f32 0.5, %v760
  %v762 = vsub.f32 1.5, %v761
  %v763 = vmul.f32 %v758, %v762
  %vm764 = vweird.f32 %v708
  %vm765 = vweird.f32 %v758
  %vm766 = vmor %vm764, %vm765
  %v767 = vsel %vm766, %v758, %v763
  %v768 = vrsqrt.pop %v709
  %v769 = vmul.f32 %v768, %v709
  %v770 = vmul.f32 %v769, %v768
  %v771 = vmul.f32 0.5, %v770
  %v772 = vsub.f32 1.5, %v771
  %v773 = vmul.f32 %v768, %v772
  %vm774 = vweird.f32 %v709
  %vm775 = vweird.f32 %v768
  %vm776 = vmor %vm774, %vm775
  %v777 = vsel %vm776, %v768, %v773
  %v778 = vrsqrt.pop %v710
  %v779 = vmul.f32 %v778, %v710
  %v780 = vmul.f32 %v779, %v778
  %v781 = vmul.f32 0.5, %v780
  %v782 = vsub.f32 1.5, %v781
  %v783 = vmul.f32 %v778, %v782
  %vm784 = vweird.f32 %v710
  %vm785 = vweird.f32 %v778
  %vm786 = vmor %vm784, %vm785
  %v787 = vsel %vm786, %v778, %v783
  %v788 = vrsqrt.pop %v711
  %v789 = vmul.f32 %v788, %v711
  %v790 = vmul.f32 %v789, %v788
  %v791 = vmul.f32 0.5, %v790
  %v792 = vsub.f32 1.5, %v791
  %v793 = vmul.f32 %v788, %v792
  %vm794 = vweird.f32 %v711
  %vm795 = vweird.f32 %v788
  %vm796 = vmor %vm794, %vm795
  %v797 = vsel %vm796, %v788, %v793
  %v798 = vrsqrt.pop %v712
  %v799 = vmul.f32 %v798, %v712
  %v800 = vmul.f32 %v799, %v798
  %v801 = vmul.f32 0.5, %v800
  %v802 = vsub.f32 1.5, %v801
  %v803 = vmul.f32 %v798, %v802
  %vm804 = vweird.f32 %v712
  %vm805 = vweird.f32 %v798
  %vm806 = vmor %vm804, %vm805
  %v807 = vsel %vm806, %v798, %v803
  %v808 = vrsqrt.pop %v713
  %v809 = vmul.f32 %v808, %v713
  %v810 = vmul.f32 %v809, %v808
  %v811 = vmul.f32 0.5, %v810
  %v812 = vsub.f32 1.5, %v811
  %v813 = vmul.f32 %v808, %v812
  %vm814 = vweird.f32 %v713
  %vm815 = vweird.f32 %v808
  %vm816 = vmor %vm814, %vm815
  %v817 = vsel %vm816, %v808, %v813
  %v818 = vrsqrt.pop %v714
  %v819 = vmul.f32 %v818, %v714
  %v820 = vmul.f32 %v819, %v818
  %v821 = vmul.f32 0.5, %v820
  %v822 = vsub.f32 1.5, %v821
  %v823 = vmul.f32 %v818, %v822
  %vm824 = vweird.f32 %v714
  %vm825 = vweird.f32 %v818
  %vm826 = vmor %vm824, %vm825
  %v827 = vsel %vm826, %v818, %v823
  %v828 = vrsqrt.pop %v715
  %v829 = vmul.f32 %v828, %v715
  %v830 = vmul.f32 %v829, %v828
  %v831 = vmul.f32 0.5, %v830
  %v832 = vsub.f32 1.5, %v831
  %v833 = vmul.f32 %v828, %v832
  %vm834 = vweird.f32 %v715
  %vm835 = vweird.f32 %v828
  %vm836 = vmor %vm834, %vm835
  %v837 = vsel %vm836, %v828, %v833
  %v838 = vrsqrt.pop %v716
  %v839 = vmul.f32 %v838, %v716
  %v840 = vmul.f32 %v839, %v838
  %v841 = vmul.f32 0.5, %v840
  %v842 = vsub.f32 1.5, %v841
  %v843 = vmul.f32 %v838, %v842
  %vm844 = vweird.f32 %v716
  %vm845 = vweird.f32 %v838
  %vm846 = vmor %vm844, %vm845
  %v847 = vsel %vm846, %v838, %v843
  %v848 = vrsqrt.pop %v717
  %v849 = vmul.f32 %v848, %v717
  %v850 = vmul.f32 %v849, %v848
  %v851 = vmul.f32 0.5, %v850
  %v852 = vsub.f32 1.5, %v851
  %v853 = vmul.f32 %v848, %v852
  %vm854 = vweird.f32 %v717
  %vm855 = vweird.f32 %v848
  %vm856 = vmor %vm854, %vm855
  %v857 = vsel %vm856, %v848, %v853
  %v858 = vmul.f32 %v690, %v727
  %v859 = vmul.f32 %v691, %v737
  %v860 = vmul.f32 %v692, %v747
  %v861 = vmul.f32 %v693, %v757
  %v862 = vmul.f32 %v694, %v767
  %v863 = vmul.f32 %v695, %v777
  %v864 = vmul.f32 %v696, %v787
  %v865 = vmul.f32 %v697, %v797
  %v866 = vmul.f32 %v698, %v807
  %v867 = vmul.f32 %v699, %v817
  %v868 = vmul.f32 %v700, %v827
  %v869 = vmul.f32 %v701, %v837
  %v870 = vmul.f32 %v702, %v847
  %v871 = vmul.f32 %v703, %v857
  %v872 = vld [vmem:[%s3] sm:$0xff]
  %v873 = vld [vmem:[%s3 + $0x8] sm:$0xff]
  %v874 = vld [vmem:[%s3 + $0x10] sm:$0xff]
  %v875 = vld [vmem:[%s3 + $0x18] sm:$0xff]
  %v876 = vld [vmem:[%s3 + $0x20] sm:$0xff]
  %v877 = vld [vmem:[%s3 + $0x28] sm:$0xff]
  %v878 = vld [vmem:[%s3 + $0x30] sm:$0xff]
  %v879 = vld [vmem:[%s3 + $0x38] sm:$0xff]
  %v880 = vld [vmem:[%s3 + $0x40] sm:$0xff]
  %v881 = vld [vmem:[%s3 + $0x48] sm:$0xff]
  %v882 = vld [vmem:[%s3 + $0x50] sm:$0xff]
  %v883 = vld [vmem:[%s3 + $0x58] sm:$0xff]
  %v884 = vld [vmem:[%s3 + $0x60] sm:$0xff]
  %v885 = vld [vmem:[%s3 + $0x68] sm:$0xff]
  %v886 = vmul.f32 %v634, %v858
  %v887 = vmul.f32 %v635, %v859
  %v888 = vmul.f32 %v636, %v860
  %v889 = vmul.f32 %v637, %v861
  %v890 = vmul.f32 %v638, %v862
  %v891 = vmul.f32 %v639, %v863
  %v892 = vmul.f32 %v640, %v864
  %v893 = vmul.f32 %v641, %v865
  %v894 = vmul.f32 %v642, %v866
  %v895 = vmul.f32 %v643, %v867
  %v896 = vmul.f32 %v644, %v868
  %v897 = vmul.f32 %v645, %v869
  %v898 = vmul.f32 %v646, %v870
  %v899 = vmul.f32 %v647, %v871
  %v900 = vsub.f32 %v872, %v886
  %v901 = vsub.f32 %v873, %v887
  %v902 = vsub.f32 %v874, %v888
  %v903 = vsub.f32 %v875, %v889
  %v904 = vsub.f32 %v876, %v890
  %v905 = vsub.f32 %v877, %v891
  %v906 = vsub.f32 %v878, %v892
  %v907 = vsub.f32 %v879, %v893
  %v908 = vsub.f32 %v880, %v894
  %v909 = vsub.f32 %v881, %v895
  %v910 = vsub.f32 %v882, %v896
  %v911 = vsub.f32 %v883, %v897
  %v912 = vsub.f32 %v884, %v898
  %v913 = vsub.f32 %v885, %v899
  %915 = vset.pattern.permute.xlu0 0
  %916 = vperm.xlu0 %915, %v858
  %v917 = vpop.permute.xlu0 %916
  %920 = vset.pattern.permute.xlu0 0
  %921 = vperm.xlu0 %920, %v859
  %v922 = vpop.permute.xlu0 %921
  %925 = vset.pattern.permute.xlu0 0
  %926 = vperm.xlu0 %925, %v860
  %v927 = vpop.permute.xlu0 %926
  %930 = vset.pattern.permute.xlu0 0
  %931 = vperm.xlu0 %930, %v861
  %v932 = vpop.permute.xlu0 %931
  %935 = vset.pattern.permute.xlu0 0
  %936 = vperm.xlu0 %935, %v862
  %v937 = vpop.permute.xlu0 %936
  %940 = vset.pattern.permute.xlu0 0
  %941 = vperm.xlu0 %940, %v863
  %v942 = vpop.permute.xlu0 %941
  %945 = vset.pattern.permute.xlu0 0
  %946 = vperm.xlu0 %945, %v864
  %v947 = vpop.permute.xlu0 %946
  %950 = vset.pattern.permute.xlu0 0
  %951 = vperm.xlu0 %950, %v865
  %v952 = vpop.permute.xlu0 %951
  %955 = vset.pattern.permute.xlu0 0
  %956 = vperm.xlu0 %955, %v866
  %v957 = vpop.permute.xlu0 %956
  %960 = vset.pattern.permute.xlu0 0
  %961 = vperm.xlu0 %960, %v867
  %v962 = vpop.permute.xlu0 %961
  %965 = vset.pattern.permute.xlu0 0
  %966 = vperm.xlu0 %965, %v868
  %v967 = vpop.permute.xlu0 %966
  %970 = vset.pattern.permute.xlu0 0
  %971 = vperm.xlu0 %970, %v869
  %v972 = vpop.permute.xlu0 %971
  %975 = vset.pattern.permute.xlu0 0
  %976 = vperm.xlu0 %975, %v870
  %v977 = vpop.permute.xlu0 %976
  %980 = vset.pattern.permute.xlu0 0
  %981 = vperm.xlu0 %980, %v871
  %v982 = vpop.permute.xlu0 %981
  %v984 = vmul.f32 %v327, %v917
  %v985 = vmul.f32 %v459, %v917
  %v986 = vmul.f32 %v329, %v922
  %v987 = vmul.f32 %v461, %v922
  %v988 = vmul.f32 %v332, %v927
  %v989 = vmul.f32 %v464, %v927
  %v990 = vmul.f32 %v334, %v932
  %v991 = vmul.f32 %v466, %v932
  %v992 = vmul.f32 %v337, %v937
  %v993 = vmul.f32 %v469, %v937
  %v994 = vmul.f32 %v339, %v942
  %v995 = vmul.f32 %v471, %v942
  %v996 = vmul.f32 %v342, %v947
  %v997 = vmul.f32 %v474, %v947
  %v998 = vmul.f32 %v344, %v952
  %v999 = vmul.f32 %v476, %v952
  %v1000 = vmul.f32 %v347, %v957
  %v1001 = vmul.f32 %v479, %v957
  %v1002 = vmul.f32 %v349, %v962
  %v1003 = vmul.f32 %v481, %v962
  %v1004 = vmul.f32 %v352, %v967
  %v1005 = vmul.f32 %v484, %v967
  %v1006 = vmul.f32 %v354, %v972
  %v1007 = vmul.f32 %v486, %v972
  %v1008 = vmul.f32 %v357, %v977
  %v1009 = vmul.f32 %v489, %v977
  %v1010 = vmul.f32 %v359, %v982
  %v1011 = vmul.f32 %v491, %v982
  %1013 = vset.pattern.permute.xlu0 0
  %1014 = vperm.xlu0 %1013, %v900
  %v1015 = vpop.permute.xlu0 %1014
  %1018 = vset.pattern.permute.xlu0 0
  %1019 = vperm.xlu0 %1018, %v901
  %v1020 = vpop.permute.xlu0 %1019
  %1023 = vset.pattern.permute.xlu0 0
  %1024 = vperm.xlu0 %1023, %v902
  %v1025 = vpop.permute.xlu0 %1024
  %1028 = vset.pattern.permute.xlu0 0
  %1029 = vperm.xlu0 %1028, %v903
  %v1030 = vpop.permute.xlu0 %1029
  %1033 = vset.pattern.permute.xlu0 0
  %1034 = vperm.xlu0 %1033, %v904
  %v1035 = vpop.permute.xlu0 %1034
  %1038 = vset.pattern.permute.xlu0 0
  %1039 = vperm.xlu0 %1038, %v905
  %v1040 = vpop.permute.xlu0 %1039
  %1043 = vset.pattern.permute.xlu0 0
  %1044 = vperm.xlu0 %1043, %v906
  %v1045 = vpop.permute.xlu0 %1044
  %1048 = vset.pattern.permute.xlu0 0
  %1049 = vperm.xlu0 %1048, %v907
  %v1050 = vpop.permute.xlu0 %1049
  %1053 = vset.pattern.permute.xlu0 0
  %1054 = vperm.xlu0 %1053, %v908
  %v1055 = vpop.permute.xlu0 %1054
  %1058 = vset.pattern.permute.xlu0 0
  %1059 = vperm.xlu0 %1058, %v909
  %v1060 = vpop.permute.xlu0 %1059
  %1063 = vset.pattern.permute.xlu0 0
  %1064 = vperm.xlu0 %1063, %v910
  %v1065 = vpop.permute.xlu0 %1064
  %1068 = vset.pattern.permute.xlu0 0
  %1069 = vperm.xlu0 %1068, %v911
  %v1070 = vpop.permute.xlu0 %1069
  %1073 = vset.pattern.permute.xlu0 0
  %1074 = vperm.xlu0 %1073, %v912
  %v1075 = vpop.permute.xlu0 %1074
  %1078 = vset.pattern.permute.xlu0 0
  %1079 = vperm.xlu0 %1078, %v913
  %v1080 = vpop.permute.xlu0 %1079
  %v1082 = vadd.f32 %v984, %v1015
  %v1083 = vadd.f32 %v985, %v1015
  %v1084 = vadd.f32 %v986, %v1020
  %v1085 = vadd.f32 %v987, %v1020
  %v1086 = vadd.f32 %v988, %v1025
  %v1087 = vadd.f32 %v989, %v1025
  %v1088 = vadd.f32 %v990, %v1030
  %v1089 = vadd.f32 %v991, %v1030
  %v1090 = vadd.f32 %v992, %v1035
  %v1091 = vadd.f32 %v993, %v1035
  %v1092 = vadd.f32 %v994, %v1040
  %v1093 = vadd.f32 %v995, %v1040
  %v1094 = vadd.f32 %v996, %v1045
  %v1095 = vadd.f32 %v997, %v1045
  %v1096 = vadd.f32 %v998, %v1050
  %v1097 = vadd.f32 %v999, %v1050
  %v1098 = vadd.f32 %v1000, %v1055
  %v1099 = vadd.f32 %v1001, %v1055
  %v1100 = vadd.f32 %v1002, %v1060
  %v1101 = vadd.f32 %v1003, %v1060
  %v1102 = vadd.f32 %v1004, %v1065
  %v1103 = vadd.f32 %v1005, %v1065
  %v1104 = vadd.f32 %v1006, %v1070
  %v1105 = vadd.f32 %v1007, %v1070
  %v1106 = vadd.f32 %v1008, %v1075
  %v1107 = vadd.f32 %v1009, %v1075
  %v1108 = vadd.f32 %v1010, %v1080
  %v1109 = vadd.f32 %v1011, %v1080
  %1110 = vst [vmem:[%s4] sm:$0xff] %v1082
  %1111 = vst.msk [vmem:[%s4 + $0x8] sm:$0xff] %vm493, %v1083
  %1112 = vst [vmem:[%s4 + $0x10] sm:$0xff] %v1084
  %1113 = vst.msk [vmem:[%s4 + $0x18] sm:$0xff] %vm493, %v1085
  %1114 = vst [vmem:[%s4 + $0x20] sm:$0xff] %v1086
  %1115 = vst.msk [vmem:[%s4 + $0x28] sm:$0xff] %vm493, %v1087
  %1116 = vst [vmem:[%s4 + $0x30] sm:$0xff] %v1088
  %1117 = vst.msk [vmem:[%s4 + $0x38] sm:$0xff] %vm493, %v1089
  %1118 = vst [vmem:[%s4 + $0x40] sm:$0xff] %v1090
  %1119 = vst.msk [vmem:[%s4 + $0x48] sm:$0xff] %vm493, %v1091
  %1120 = vst [vmem:[%s4 + $0x50] sm:$0xff] %v1092
  %1121 = vst.msk [vmem:[%s4 + $0x58] sm:$0xff] %vm493, %v1093
  %1122 = vst [vmem:[%s4 + $0x60] sm:$0xff] %v1094
  %1123 = vst.msk [vmem:[%s4 + $0x68] sm:$0xff] %vm493, %v1095
  %1124 = vst [vmem:[%s4 + $0x70] sm:$0xff] %v1096
  %1125 = vst.msk [vmem:[%s4 + $0x78] sm:$0xff] %vm493, %v1097
  %1126 = vst [vmem:[%s4 + $0x80] sm:$0xff] %v1098
  %1127 = vst.msk [vmem:[%s4 + $0x88] sm:$0xff] %vm493, %v1099
  %1128 = vst [vmem:[%s4 + $0x90] sm:$0xff] %v1100
  %1129 = vst.msk [vmem:[%s4 + $0x98] sm:$0xff] %vm493, %v1101
  %1130 = vst [vmem:[%s4 + $0xa0] sm:$0xff] %v1102
  %1131 = vst.msk [vmem:[%s4 + $0xa8] sm:$0xff] %vm493, %v1103
  %1132 = vst [vmem:[%s4 + $0xb0] sm:$0xff] %v1104
  %1133 = vst.msk [vmem:[%s4 + $0xb8] sm:$0xff] %vm493, %v1105
  %1134 = vst [vmem:[%s4 + $0xc0] sm:$0xff] %v1106
  %1135 = vst.msk [vmem:[%s4 + $0xc8] sm:$0xff] %vm493, %v1107
  %1136 = vst [vmem:[%s4 + $0xd0] sm:$0xff] %v1108
  %1137 = vst.msk [vmem:[%s4 + $0xd8] sm:$0xff] %vm493, %v1109
  %v1138 = vld [vmem:[%s0 + $0x150] sm:$0xff]
  %v1139 = vld [vmem:[%s0 + $0x158] sm:$0xff]
  %v1140 = vld [vmem:[%s0 + $0x160] sm:$0xff]
  %v1141 = vld [vmem:[%s0 + $0x168] sm:$0xff]
  %v1142 = vld [vmem:[%s0 + $0x170] sm:$0xff]
  %v1143 = vld [vmem:[%s0 + $0x178] sm:$0xff]
  %v1144 = vld [vmem:[%s0 + $0x180] sm:$0xff]
  %v1145 = vld [vmem:[%s0 + $0x188] sm:$0xff]
  %v1146 = vld [vmem:[%s0 + $0x190] sm:$0xff]
  %v1147 = vld [vmem:[%s0 + $0x198] sm:$0xff]
  %v1148 = vld [vmem:[%s0 + $0x1a0] sm:$0xff]
  %v1149 = vld [vmem:[%s0 + $0x1a8] sm:$0xff]
  %v1150 = vld [vmem:[%s0 + $0x1b0] sm:$0xff]
  %v1151 = vld [vmem:[%s0 + $0x1b8] sm:$0xff]
  %v1152 = vld [vmem:[%s0 + $0x1c0] sm:$0xff]
  %v1153 = vld [vmem:[%s0 + $0x1c8] sm:$0xff]
  %v1154 = vld [vmem:[%s0 + $0x1d0] sm:$0xff]
  %v1155 = vld [vmem:[%s0 + $0x1d8] sm:$0xff]
  %v1156 = vld [vmem:[%s0 + $0x1e0] sm:$0xff]
  %v1157 = vld [vmem:[%s0 + $0x1e8] sm:$0xff]
  %v1158 = vld [vmem:[%s0 + $0x1f0] sm:$0xff]
  %v1159 = vld [vmem:[%s0 + $0x1f8] sm:$0xff]
  %v1160 = vld [vmem:[%s0 + $0x200] sm:$0xff]
  %v1161 = vld [vmem:[%s0 + $0x208] sm:$0xff]
  %v1162 = vld [vmem:[%s0 + $0x210] sm:$0xff]
  %v1163 = vld [vmem:[%s0 + $0x218] sm:$0xff]
  %v1164 = vld [vmem:[%s0 + $0x220] sm:$0xff]
  %v1165 = vld [vmem:[%s0 + $0x228] sm:$0xff]
  %v1166 = vld [vmem:[%s0 + $0x230] sm:$0xff]
  %v1167 = vld [vmem:[%s0 + $0x238] sm:$0xff]
  %v1168 = vld [vmem:[%s0 + $0x240] sm:$0xff]
  %v1169 = vld [vmem:[%s0 + $0x248] sm:$0xff]
  %v1170 = vld [vmem:[%s0 + $0x250] sm:$0xff]
  %v1171 = vld [vmem:[%s0 + $0x258] sm:$0xff]
  %v1172 = vld [vmem:[%s0 + $0x260] sm:$0xff]
  %v1173 = vld [vmem:[%s0 + $0x268] sm:$0xff]
  %v1174 = vld [vmem:[%s0 + $0x270] sm:$0xff]
  %v1175 = vld [vmem:[%s0 + $0x278] sm:$0xff]
  %v1176 = vld [vmem:[%s0 + $0x280] sm:$0xff]
  %v1177 = vld [vmem:[%s0 + $0x288] sm:$0xff]
  %v1178 = vld [vmem:[%s0 + $0x290] sm:$0xff]
  %v1179 = vld [vmem:[%s0 + $0x298] sm:$0xff]
  %v1180 = vpack.c.bf16 %v1141, %v1138
  %v1181 = vpack.c.bf16 %v1142, %v1139
  %v1182 = vpack.c.bf16 %v1143, %v1140
  %v1183 = vpack.c.bf16 %v1147, %v1144
  %v1184 = vpack.c.bf16 %v1148, %v1145
  %v1185 = vpack.c.bf16 %v1149, %v1146
  %v1186 = vpack.c.bf16 %v1153, %v1150
  %v1187 = vpack.c.bf16 %v1154, %v1151
  %v1188 = vpack.c.bf16 %v1155, %v1152
  %v1189 = vpack.c.bf16 %v1159, %v1156
  %v1190 = vpack.c.bf16 %v1160, %v1157
  %v1191 = vpack.c.bf16 %v1161, %v1158
  %v1192 = vpack.c.bf16 %v1165, %v1162
  %v1193 = vpack.c.bf16 %v1166, %v1163
  %v1194 = vpack.c.bf16 %v1167, %v1164
  %v1195 = vpack.c.bf16 %v1171, %v1168
  %v1196 = vpack.c.bf16 %v1172, %v1169
  %v1197 = vpack.c.bf16 %v1173, %v1170
  %v1198 = vpack.c.bf16 %v1177, %v1174
  %v1199 = vpack.c.bf16 %v1178, %v1175
  %v1200 = vpack.c.bf16 %v1179, %v1176
  %v1202 = vsel %vm207, %v1182, 0
  %v1205 = vsel %vm207, %v1185, 0
  %v1208 = vsel %vm207, %v1188, 0
  %v1211 = vsel %vm207, %v1191, 0
  %v1214 = vsel %vm207, %v1194, 0
  %v1217 = vsel %vm207, %v1197, 0
  %v1220 = vsel %vm207, %v1200, 0
  %1222 = vmatpush.bf16.msra.mxu0 %v116
  %1223 = vmatpush.bf16.msra.mxu0 %v114
  %1224 = vmatpush.bf16.msra.mxu0 %v112
  %1225 = vmatpush.bf16.msra.mxu0 %v110
  %1226 = vmatpush.bf16.msra.mxu0 %v108
  %1227 = vmatpush.bf16.msra.mxu0 %v106
  %1228 = vmatpush.bf16.msra.mxu0 %v104
  %1229 = vmatpush.bf16.msra.mxu0 %v102
  %1230 = vmatmul.bf16.gmra.mxu0 %v1180
  %v1231 = vpop.f32.mrf.mxu0
  %v1232 = vadd.f32 0.0, %v1231
  %v1233 = vpop.f32.mrf.mxu0
  %v1234 = vadd.f32 0.0, %v1233
  %1235 = vmatmul.bf16.gmra.mxu0 %v1183
  %v1236 = vpop.f32.mrf.mxu0
  %v1237 = vadd.f32 0.0, %v1236
  %v1238 = vpop.f32.mrf.mxu0
  %v1239 = vadd.f32 0.0, %v1238
  %1240 = vmatmul.bf16.gmra.mxu0 %v1186
  %v1241 = vpop.f32.mrf.mxu0
  %v1242 = vadd.f32 0.0, %v1241
  %v1243 = vpop.f32.mrf.mxu0
  %v1244 = vadd.f32 0.0, %v1243
  %1245 = vmatmul.bf16.gmra.mxu0 %v1189
  %v1246 = vpop.f32.mrf.mxu0
  %v1247 = vadd.f32 0.0, %v1246
  %v1248 = vpop.f32.mrf.mxu0
  %v1249 = vadd.f32 0.0, %v1248
  %1250 = vmatmul.bf16.gmra.mxu0 %v1192
  %v1251 = vpop.f32.mrf.mxu0
  %v1252 = vadd.f32 0.0, %v1251
  %v1253 = vpop.f32.mrf.mxu0
  %v1254 = vadd.f32 0.0, %v1253
  %1255 = vmatmul.bf16.gmra.mxu0 %v1195
  %v1256 = vpop.f32.mrf.mxu0
  %v1257 = vadd.f32 0.0, %v1256
  %v1258 = vpop.f32.mrf.mxu0
  %v1259 = vadd.f32 0.0, %v1258
  %1260 = vmatmul.bf16.gmra.mxu0 %v1198
  %v1261 = vpop.f32.mrf.mxu0
  %v1262 = vadd.f32 0.0, %v1261
  %v1263 = vpop.f32.mrf.mxu0
  %v1264 = vadd.f32 0.0, %v1263
  %1265 = vdwg.mxu0
  %1266 = vmatpush.bf16.msra.mxu0 %v132
  %1267 = vmatpush.bf16.msra.mxu0 %v130
  %1268 = vmatpush.bf16.msra.mxu0 %v128
  %1269 = vmatpush.bf16.msra.mxu0 %v126
  %1270 = vmatpush.bf16.msra.mxu0 %v124
  %1271 = vmatpush.bf16.msra.mxu0 %v122
  %1272 = vmatpush.bf16.msra.mxu0 %v120
  %1273 = vmatpush.bf16.msra.mxu0 %v118
  %1274 = vmatmul.bf16.gmra.mxu0 %v1181
  %v1275 = vpop.f32.mrf.mxu0
  %v1276 = vadd.f32 %v1232, %v1275
  %v1277 = vpop.f32.mrf.mxu0
  %v1278 = vadd.f32 %v1234, %v1277
  %1279 = vmatmul.bf16.gmra.mxu0 %v1184
  %v1280 = vpop.f32.mrf.mxu0
  %v1281 = vadd.f32 %v1237, %v1280
  %v1282 = vpop.f32.mrf.mxu0
  %v1283 = vadd.f32 %v1239, %v1282
  %1284 = vmatmul.bf16.gmra.mxu0 %v1187
  %v1285 = vpop.f32.mrf.mxu0
  %v1286 = vadd.f32 %v1242, %v1285
  %v1287 = vpop.f32.mrf.mxu0
  %v1288 = vadd.f32 %v1244, %v1287
  %1289 = vmatmul.bf16.gmra.mxu0 %v1190
  %v1290 = vpop.f32.mrf.mxu0
  %v1291 = vadd.f32 %v1247, %v1290
  %v1292 = vpop.f32.mrf.mxu0
  %v1293 = vadd.f32 %v1249, %v1292
  %1294 = vmatmul.bf16.gmra.mxu0 %v1193
  %v1295 = vpop.f32.mrf.mxu0
  %v1296 = vadd.f32 %v1252, %v1295
  %v1297 = vpop.f32.mrf.mxu0
  %v1298 = vadd.f32 %v1254, %v1297
  %1299 = vmatmul.bf16.gmra.mxu0 %v1196
  %v1300 = vpop.f32.mrf.mxu0
  %v1301 = vadd.f32 %v1257, %v1300
  %v1302 = vpop.f32.mrf.mxu0
  %v1303 = vadd.f32 %v1259, %v1302
  %1304 = vmatmul.bf16.gmra.mxu0 %v1199
  %v1305 = vpop.f32.mrf.mxu0
  %v1306 = vadd.f32 %v1262, %v1305
  %v1307 = vpop.f32.mrf.mxu0
  %v1308 = vadd.f32 %v1264, %v1307
  %1309 = vdwg.mxu0
  %1310 = vmatpush.bf16.msra.mxu0 0
  %1311 = vmatpush.bf16.msra.mxu0 0
  %1312 = vmatpush.bf16.msra.mxu0 0
  %1313 = vmatpush.bf16.msra.mxu0 %v142
  %1314 = vmatpush.bf16.msra.mxu0 %v140
  %1315 = vmatpush.bf16.msra.mxu0 %v138
  %1316 = vmatpush.bf16.msra.mxu0 %v136
  %1317 = vmatpush.bf16.msra.mxu0 %v134
  %1318 = vmatmul.bf16.gmra.mxu0 %v1202
  %v1319 = vpop.f32.mrf.mxu0
  %v1320 = vadd.f32 %v1276, %v1319
  %v1321 = vpop.f32.mrf.mxu0
  %v1322 = vadd.f32 %v1278, %v1321
  %1323 = vmatmul.bf16.gmra.mxu0 %v1205
  %v1324 = vpop.f32.mrf.mxu0
  %v1325 = vadd.f32 %v1281, %v1324
  %v1326 = vpop.f32.mrf.mxu0
  %v1327 = vadd.f32 %v1283, %v1326
  %1328 = vmatmul.bf16.gmra.mxu0 %v1208
  %v1329 = vpop.f32.mrf.mxu0
  %v1330 = vadd.f32 %v1286, %v1329
  %v1331 = vpop.f32.mrf.mxu0
  %v1332 = vadd.f32 %v1288, %v1331
  %1333 = vmatmul.bf16.gmra.mxu0 %v1211
  %v1334 = vpop.f32.mrf.mxu0
  %v1335 = vadd.f32 %v1291, %v1334
  %v1336 = vpop.f32.mrf.mxu0
  %v1337 = vadd.f32 %v1293, %v1336
  %1338 = vmatmul.bf16.gmra.mxu0 %v1214
  %v1339 = vpop.f32.mrf.mxu0
  %v1340 = vadd.f32 %v1296, %v1339
  %v1341 = vpop.f32.mrf.mxu0
  %v1342 = vadd.f32 %v1298, %v1341
  %1343 = vmatmul.bf16.gmra.mxu0 %v1217
  %v1344 = vpop.f32.mrf.mxu0
  %v1345 = vadd.f32 %v1301, %v1344
  %v1346 = vpop.f32.mrf.mxu0
  %v1347 = vadd.f32 %v1303, %v1346
  %1348 = vmatmul.bf16.gmra.mxu0 %v1220
  %v1349 = vpop.f32.mrf.mxu0
  %v1350 = vadd.f32 %v1306, %v1349
  %v1351 = vpop.f32.mrf.mxu0
  %v1352 = vadd.f32 %v1308, %v1351
  %1353 = vdwg.mxu0
  %1354 = vmatpush.bf16.msra.mxu0 %v117
  %1355 = vmatpush.bf16.msra.mxu0 %v115
  %1356 = vmatpush.bf16.msra.mxu0 %v113
  %1357 = vmatpush.bf16.msra.mxu0 %v111
  %1358 = vmatpush.bf16.msra.mxu0 %v109
  %1359 = vmatpush.bf16.msra.mxu0 %v107
  %1360 = vmatpush.bf16.msra.mxu0 %v105
  %1361 = vmatpush.bf16.msra.mxu0 %v103
  %1362 = vmatmul.bf16.gmra.mxu0 %v1180
  %v1363 = vpop.f32.mrf.mxu0
  %v1364 = vadd.f32 0.0, %v1363
  %v1365 = vpop.f32.mrf.mxu0
  %v1366 = vadd.f32 0.0, %v1365
  %1367 = vmatmul.bf16.gmra.mxu0 %v1183
  %v1368 = vpop.f32.mrf.mxu0
  %v1369 = vadd.f32 0.0, %v1368
  %v1370 = vpop.f32.mrf.mxu0
  %v1371 = vadd.f32 0.0, %v1370
  %1372 = vmatmul.bf16.gmra.mxu0 %v1186
  %v1373 = vpop.f32.mrf.mxu0
  %v1374 = vadd.f32 0.0, %v1373
  %v1375 = vpop.f32.mrf.mxu0
  %v1376 = vadd.f32 0.0, %v1375
  %1377 = vmatmul.bf16.gmra.mxu0 %v1189
  %v1378 = vpop.f32.mrf.mxu0
  %v1379 = vadd.f32 0.0, %v1378
  %v1380 = vpop.f32.mrf.mxu0
  %v1381 = vadd.f32 0.0, %v1380
  %1382 = vmatmul.bf16.gmra.mxu0 %v1192
  %v1383 = vpop.f32.mrf.mxu0
  %v1384 = vadd.f32 0.0, %v1383
  %v1385 = vpop.f32.mrf.mxu0
  %v1386 = vadd.f32 0.0, %v1385
  %1387 = vmatmul.bf16.gmra.mxu0 %v1195
  %v1388 = vpop.f32.mrf.mxu0
  %v1389 = vadd.f32 0.0, %v1388
  %v1390 = vpop.f32.mrf.mxu0
  %v1391 = vadd.f32 0.0, %v1390
  %1392 = vmatmul.bf16.gmra.mxu0 %v1198
  %v1393 = vpop.f32.mrf.mxu0
  %v1394 = vadd.f32 0.0, %v1393
  %v1395 = vpop.f32.mrf.mxu0
  %v1396 = vadd.f32 0.0, %v1395
  %1397 = vdwg.mxu0
  %1398 = vmatpush.bf16.msra.mxu0 %v133
  %1399 = vmatpush.bf16.msra.mxu0 %v131
  %1400 = vmatpush.bf16.msra.mxu0 %v129
  %1401 = vmatpush.bf16.msra.mxu0 %v127
  %1402 = vmatpush.bf16.msra.mxu0 %v125
  %1403 = vmatpush.bf16.msra.mxu0 %v123
  %1404 = vmatpush.bf16.msra.mxu0 %v121
  %1405 = vmatpush.bf16.msra.mxu0 %v119
  %1406 = vmatmul.bf16.gmra.mxu0 %v1181
  %v1407 = vpop.f32.mrf.mxu0
  %v1408 = vadd.f32 %v1364, %v1407
  %v1409 = vpop.f32.mrf.mxu0
  %v1410 = vadd.f32 %v1366, %v1409
  %1411 = vmatmul.bf16.gmra.mxu0 %v1184
  %v1412 = vpop.f32.mrf.mxu0
  %v1413 = vadd.f32 %v1369, %v1412
  %v1414 = vpop.f32.mrf.mxu0
  %v1415 = vadd.f32 %v1371, %v1414
  %1416 = vmatmul.bf16.gmra.mxu0 %v1187
  %v1417 = vpop.f32.mrf.mxu0
  %v1418 = vadd.f32 %v1374, %v1417
  %v1419 = vpop.f32.mrf.mxu0
  %v1420 = vadd.f32 %v1376, %v1419
  %1421 = vmatmul.bf16.gmra.mxu0 %v1190
  %v1422 = vpop.f32.mrf.mxu0
  %v1423 = vadd.f32 %v1379, %v1422
  %v1424 = vpop.f32.mrf.mxu0
  %v1425 = vadd.f32 %v1381, %v1424
  %1426 = vmatmul.bf16.gmra.mxu0 %v1193
  %v1427 = vpop.f32.mrf.mxu0
  %v1428 = vadd.f32 %v1384, %v1427
  %v1429 = vpop.f32.mrf.mxu0
  %v1430 = vadd.f32 %v1386, %v1429
  %1431 = vmatmul.bf16.gmra.mxu0 %v1196
  %v1432 = vpop.f32.mrf.mxu0
  %v1433 = vadd.f32 %v1389, %v1432
  %v1434 = vpop.f32.mrf.mxu0
  %v1435 = vadd.f32 %v1391, %v1434
  %1436 = vmatmul.bf16.gmra.mxu0 %v1199
  %v1437 = vpop.f32.mrf.mxu0
  %v1438 = vadd.f32 %v1394, %v1437
  %v1439 = vpop.f32.mrf.mxu0
  %v1440 = vadd.f32 %v1396, %v1439
  %1441 = vdwg.mxu0
  %1442 = vmatpush.bf16.msra.mxu0 0
  %1443 = vmatpush.bf16.msra.mxu0 0
  %1444 = vmatpush.bf16.msra.mxu0 0
  %1445 = vmatpush.bf16.msra.mxu0 %v143
  %1446 = vmatpush.bf16.msra.mxu0 %v141
  %1447 = vmatpush.bf16.msra.mxu0 %v139
  %1448 = vmatpush.bf16.msra.mxu0 %v137
  %1449 = vmatpush.bf16.msra.mxu0 %v135
  %1450 = vmatmul.bf16.gmra.mxu0 %v1202
  %v1451 = vpop.f32.mrf.mxu0
  %v1452 = vadd.f32 %v1408, %v1451
  %v1453 = vpop.f32.mrf.mxu0
  %v1454 = vadd.f32 %v1410, %v1453
  %1455 = vmatmul.bf16.gmra.mxu0 %v1205
  %v1456 = vpop.f32.mrf.mxu0
  %v1457 = vadd.f32 %v1413, %v1456
  %v1458 = vpop.f32.mrf.mxu0
  %v1459 = vadd.f32 %v1415, %v1458
  %1460 = vmatmul.bf16.gmra.mxu0 %v1208
  %v1461 = vpop.f32.mrf.mxu0
  %v1462 = vadd.f32 %v1418, %v1461
  %v1463 = vpop.f32.mrf.mxu0
  %v1464 = vadd.f32 %v1420, %v1463
  %1465 = vmatmul.bf16.gmra.mxu0 %v1211
  %v1466 = vpop.f32.mrf.mxu0
  %v1467 = vadd.f32 %v1423, %v1466
  %v1468 = vpop.f32.mrf.mxu0
  %v1469 = vadd.f32 %v1425, %v1468
  %1470 = vmatmul.bf16.gmra.mxu0 %v1214
  %v1471 = vpop.f32.mrf.mxu0
  %v1472 = vadd.f32 %v1428, %v1471
  %v1473 = vpop.f32.mrf.mxu0
  %v1474 = vadd.f32 %v1430, %v1473
  %1475 = vmatmul.bf16.gmra.mxu0 %v1217
  %v1476 = vpop.f32.mrf.mxu0
  %v1477 = vadd.f32 %v1433, %v1476
  %v1478 = vpop.f32.mrf.mxu0
  %v1479 = vadd.f32 %v1435, %v1478
  %1480 = vmatmul.bf16.gmra.mxu0 %v1220
  %v1481 = vpop.f32.mrf.mxu0
  %v1482 = vadd.f32 %v1438, %v1481
  %v1483 = vpop.f32.mrf.mxu0
  %v1484 = vadd.f32 %v1440, %v1483
  %1485 = vdwg.mxu0
  %v1486 = vsel %vm493, %v1452, 0.0
  %v1487 = vadd.f32 %v1320, %v1486
  %1488 = vadd.xlane.f32.xlu0 %v1487
  %v1489 = vpop.xlane.xlu0 %1488
  %v1490 = vsel %vm493, %v1454, 0.0
  %v1491 = vadd.f32 %v1322, %v1490
  %1492 = vadd.xlane.f32.xlu0 %v1491
  %v1493 = vpop.xlane.xlu0 %1492
  %v1494 = vsel %vm493, %v1457, 0.0
  %v1495 = vadd.f32 %v1325, %v1494
  %1496 = vadd.xlane.f32.xlu0 %v1495
  %v1497 = vpop.xlane.xlu0 %1496
  %v1498 = vsel %vm493, %v1459, 0.0
  %v1499 = vadd.f32 %v1327, %v1498
  %1500 = vadd.xlane.f32.xlu0 %v1499
  %v1501 = vpop.xlane.xlu0 %1500
  %v1502 = vsel %vm493, %v1462, 0.0
  %v1503 = vadd.f32 %v1330, %v1502
  %1504 = vadd.xlane.f32.xlu0 %v1503
  %v1505 = vpop.xlane.xlu0 %1504
  %v1506 = vsel %vm493, %v1464, 0.0
  %v1507 = vadd.f32 %v1332, %v1506
  %1508 = vadd.xlane.f32.xlu0 %v1507
  %v1509 = vpop.xlane.xlu0 %1508
  %v1510 = vsel %vm493, %v1467, 0.0
  %v1511 = vadd.f32 %v1335, %v1510
  %1512 = vadd.xlane.f32.xlu0 %v1511
  %v1513 = vpop.xlane.xlu0 %1512
  %v1514 = vsel %vm493, %v1469, 0.0
  %v1515 = vadd.f32 %v1337, %v1514
  %1516 = vadd.xlane.f32.xlu0 %v1515
  %v1517 = vpop.xlane.xlu0 %1516
  %v1518 = vsel %vm493, %v1472, 0.0
  %v1519 = vadd.f32 %v1340, %v1518
  %1520 = vadd.xlane.f32.xlu0 %v1519
  %v1521 = vpop.xlane.xlu0 %1520
  %v1522 = vsel %vm493, %v1474, 0.0
  %v1523 = vadd.f32 %v1342, %v1522
  %1524 = vadd.xlane.f32.xlu0 %v1523
  %v1525 = vpop.xlane.xlu0 %1524
  %v1526 = vsel %vm493, %v1477, 0.0
  %v1527 = vadd.f32 %v1345, %v1526
  %1528 = vadd.xlane.f32.xlu0 %v1527
  %v1529 = vpop.xlane.xlu0 %1528
  %v1530 = vsel %vm493, %v1479, 0.0
  %v1531 = vadd.f32 %v1347, %v1530
  %1532 = vadd.xlane.f32.xlu0 %v1531
  %v1533 = vpop.xlane.xlu0 %1532
  %v1534 = vsel %vm493, %v1482, 0.0
  %v1535 = vadd.f32 %v1350, %v1534
  %1536 = vadd.xlane.f32.xlu0 %v1535
  %v1537 = vpop.xlane.xlu0 %1536
  %v1538 = vsel %vm493, %v1484, 0.0
  %v1539 = vadd.f32 %v1352, %v1538
  %1540 = vadd.xlane.f32.xlu0 %v1539
  %v1541 = vpop.xlane.xlu0 %1540
  %v1542 = vmul.f32 %v1320, %v1320
  %v1543 = vmul.f32 %v1452, %v1452
  %v1544 = vmul.f32 %v1322, %v1322
  %v1545 = vmul.f32 %v1454, %v1454
  %v1546 = vmul.f32 %v1325, %v1325
  %v1547 = vmul.f32 %v1457, %v1457
  %v1548 = vmul.f32 %v1327, %v1327
  %v1549 = vmul.f32 %v1459, %v1459
  %v1550 = vmul.f32 %v1330, %v1330
  %v1551 = vmul.f32 %v1462, %v1462
  %v1552 = vmul.f32 %v1332, %v1332
  %v1553 = vmul.f32 %v1464, %v1464
  %v1554 = vmul.f32 %v1335, %v1335
  %v1555 = vmul.f32 %v1467, %v1467
  %v1556 = vmul.f32 %v1337, %v1337
  %v1557 = vmul.f32 %v1469, %v1469
  %v1558 = vmul.f32 %v1340, %v1340
  %v1559 = vmul.f32 %v1472, %v1472
  %v1560 = vmul.f32 %v1342, %v1342
  %v1561 = vmul.f32 %v1474, %v1474
  %v1562 = vmul.f32 %v1345, %v1345
  %v1563 = vmul.f32 %v1477, %v1477
  %v1564 = vmul.f32 %v1347, %v1347
  %v1565 = vmul.f32 %v1479, %v1479
  %v1566 = vmul.f32 %v1350, %v1350
  %v1567 = vmul.f32 %v1482, %v1482
  %v1568 = vmul.f32 %v1352, %v1352
  %v1569 = vmul.f32 %v1484, %v1484
  %v1570 = vsel %vm493, %v1543, 0.0
  %v1571 = vadd.f32 %v1542, %v1570
  %1572 = vadd.xlane.f32.xlu0 %v1571
  %v1573 = vpop.xlane.xlu0 %1572
  %v1574 = vsel %vm493, %v1545, 0.0
  %v1575 = vadd.f32 %v1544, %v1574
  %1576 = vadd.xlane.f32.xlu0 %v1575
  %v1577 = vpop.xlane.xlu0 %1576
  %v1578 = vsel %vm493, %v1547, 0.0
  %v1579 = vadd.f32 %v1546, %v1578
  %1580 = vadd.xlane.f32.xlu0 %v1579
  %v1581 = vpop.xlane.xlu0 %1580
  %v1582 = vsel %vm493, %v1549, 0.0
  %v1583 = vadd.f32 %v1548, %v1582
  %1584 = vadd.xlane.f32.xlu0 %v1583
  %v1585 = vpop.xlane.xlu0 %1584
  %v1586 = vsel %vm493, %v1551, 0.0
  %v1587 = vadd.f32 %v1550, %v1586
  %1588 = vadd.xlane.f32.xlu0 %v1587
  %v1589 = vpop.xlane.xlu0 %1588
  %v1590 = vsel %vm493, %v1553, 0.0
  %v1591 = vadd.f32 %v1552, %v1590
  %1592 = vadd.xlane.f32.xlu0 %v1591
  %v1593 = vpop.xlane.xlu0 %1592
  %v1594 = vsel %vm493, %v1555, 0.0
  %v1595 = vadd.f32 %v1554, %v1594
  %1596 = vadd.xlane.f32.xlu0 %v1595
  %v1597 = vpop.xlane.xlu0 %1596
  %v1598 = vsel %vm493, %v1557, 0.0
  %v1599 = vadd.f32 %v1556, %v1598
  %1600 = vadd.xlane.f32.xlu0 %v1599
  %v1601 = vpop.xlane.xlu0 %1600
  %v1602 = vsel %vm493, %v1559, 0.0
  %v1603 = vadd.f32 %v1558, %v1602
  %1604 = vadd.xlane.f32.xlu0 %v1603
  %v1605 = vpop.xlane.xlu0 %1604
  %v1606 = vsel %vm493, %v1561, 0.0
  %v1607 = vadd.f32 %v1560, %v1606
  %1608 = vadd.xlane.f32.xlu0 %v1607
  %v1609 = vpop.xlane.xlu0 %1608
  %v1610 = vsel %vm493, %v1563, 0.0
  %v1611 = vadd.f32 %v1562, %v1610
  %1612 = vadd.xlane.f32.xlu0 %v1611
  %v1613 = vpop.xlane.xlu0 %1612
  %v1614 = vsel %vm493, %v1565, 0.0
  %v1615 = vadd.f32 %v1564, %v1614
  %1616 = vadd.xlane.f32.xlu0 %v1615
  %v1617 = vpop.xlane.xlu0 %1616
  %v1618 = vsel %vm493, %v1567, 0.0
  %v1619 = vadd.f32 %v1566, %v1618
  %1620 = vadd.xlane.f32.xlu0 %v1619
  %v1621 = vpop.xlane.xlu0 %1620
  %v1622 = vsel %vm493, %v1569, 0.0
  %v1623 = vadd.f32 %v1568, %v1622
  %1624 = vadd.xlane.f32.xlu0 %v1623
  %v1625 = vpop.xlane.xlu0 %1624
  %v1626 = vmul.f32 %v1489, 0.0051020407
  %v1627 = vmul.f32 %v1493, 0.0051020407
  %v1628 = vmul.f32 %v1497, 0.0051020407
  %v1629 = vmul.f32 %v1501, 0.0051020407
  %v1630 = vmul.f32 %v1505, 0.0051020407
  %v1631 = vmul.f32 %v1509, 0.0051020407
  %v1632 = vmul.f32 %v1513, 0.0051020407
  %v1633 = vmul.f32 %v1517, 0.0051020407
  %v1634 = vmul.f32 %v1521, 0.0051020407
  %v1635 = vmul.f32 %v1525, 0.0051020407
  %v1636 = vmul.f32 %v1529, 0.0051020407
  %v1637 = vmul.f32 %v1533, 0.0051020407
  %v1638 = vmul.f32 %v1537, 0.0051020407
  %v1639 = vmul.f32 %v1541, 0.0051020407
  %v1640 = vmul.f32 %v1573, 0.0051020407
  %v1641 = vmul.f32 %v1577, 0.0051020407
  %v1642 = vmul.f32 %v1581, 0.0051020407
  %v1643 = vmul.f32 %v1585, 0.0051020407
  %v1644 = vmul.f32 %v1589, 0.0051020407
  %v1645 = vmul.f32 %v1593, 0.0051020407
  %v1646 = vmul.f32 %v1597, 0.0051020407
  %v1647 = vmul.f32 %v1601, 0.0051020407
  %v1648 = vmul.f32 %v1605, 0.0051020407
  %v1649 = vmul.f32 %v1609, 0.0051020407
  %v1650 = vmul.f32 %v1613, 0.0051020407
  %v1651 = vmul.f32 %v1617, 0.0051020407
  %v1652 = vmul.f32 %v1621, 0.0051020407
  %v1653 = vmul.f32 %v1625, 0.0051020407
  %v1654 = vmul.f32 %v1626, %v1626
  %v1655 = vmul.f32 %v1627, %v1627
  %v1656 = vmul.f32 %v1628, %v1628
  %v1657 = vmul.f32 %v1629, %v1629
  %v1658 = vmul.f32 %v1630, %v1630
  %v1659 = vmul.f32 %v1631, %v1631
  %v1660 = vmul.f32 %v1632, %v1632
  %v1661 = vmul.f32 %v1633, %v1633
  %v1662 = vmul.f32 %v1634, %v1634
  %v1663 = vmul.f32 %v1635, %v1635
  %v1664 = vmul.f32 %v1636, %v1636
  %v1665 = vmul.f32 %v1637, %v1637
  %v1666 = vmul.f32 %v1638, %v1638
  %v1667 = vmul.f32 %v1639, %v1639
  %v1668 = vsub.f32 %v1640, %v1654
  %v1669 = vsub.f32 %v1641, %v1655
  %v1670 = vsub.f32 %v1642, %v1656
  %v1671 = vsub.f32 %v1643, %v1657
  %v1672 = vsub.f32 %v1644, %v1658
  %v1673 = vsub.f32 %v1645, %v1659
  %v1674 = vsub.f32 %v1646, %v1660
  %v1675 = vsub.f32 %v1647, %v1661
  %v1676 = vsub.f32 %v1648, %v1662
  %v1677 = vsub.f32 %v1649, %v1663
  %v1678 = vsub.f32 %v1650, %v1664
  %v1679 = vsub.f32 %v1651, %v1665
  %v1680 = vsub.f32 %v1652, %v1666
  %v1681 = vsub.f32 %v1653, %v1667
  %v1682 = vld [vmem:[%s2 + $0x70] sm:$0xff]
  %v1683 = vld [vmem:[%s2 + $0x78] sm:$0xff]
  %v1684 = vld [vmem:[%s2 + $0x80] sm:$0xff]
  %v1685 = vld [vmem:[%s2 + $0x88] sm:$0xff]
  %v1686 = vld [vmem:[%s2 + $0x90] sm:$0xff]
  %v1687 = vld [vmem:[%s2 + $0x98] sm:$0xff]
  %v1688 = vld [vmem:[%s2 + $0xa0] sm:$0xff]
  %v1689 = vld [vmem:[%s2 + $0xa8] sm:$0xff]
  %v1690 = vld [vmem:[%s2 + $0xb0] sm:$0xff]
  %v1691 = vld [vmem:[%s2 + $0xb8] sm:$0xff]
  %v1692 = vld [vmem:[%s2 + $0xc0] sm:$0xff]
  %v1693 = vld [vmem:[%s2 + $0xc8] sm:$0xff]
  %v1694 = vld [vmem:[%s2 + $0xd0] sm:$0xff]
  %v1695 = vld [vmem:[%s2 + $0xd8] sm:$0xff]
  %v1696 = vadd.f32 %v1668, 1e-05
  %v1697 = vadd.f32 %v1669, 1e-05
  %v1698 = vadd.f32 %v1670, 1e-05
  %v1699 = vadd.f32 %v1671, 1e-05
  %v1700 = vadd.f32 %v1672, 1e-05
  %v1701 = vadd.f32 %v1673, 1e-05
  %v1702 = vadd.f32 %v1674, 1e-05
  %v1703 = vadd.f32 %v1675, 1e-05
  %v1704 = vadd.f32 %v1676, 1e-05
  %v1705 = vadd.f32 %v1677, 1e-05
  %v1706 = vadd.f32 %v1678, 1e-05
  %v1707 = vadd.f32 %v1679, 1e-05
  %v1708 = vadd.f32 %v1680, 1e-05
  %v1709 = vadd.f32 %v1681, 1e-05
  %v1710 = vrsqrt.pop %v1696
  %v1711 = vmul.f32 %v1710, %v1696
  %v1712 = vmul.f32 %v1711, %v1710
  %v1713 = vmul.f32 0.5, %v1712
  %v1714 = vsub.f32 1.5, %v1713
  %v1715 = vmul.f32 %v1710, %v1714
  %vm1716 = vweird.f32 %v1696
  %vm1717 = vweird.f32 %v1710
  %vm1718 = vmor %vm1716, %vm1717
  %v1719 = vsel %vm1718, %v1710, %v1715
  %v1720 = vrsqrt.pop %v1697
  %v1721 = vmul.f32 %v1720, %v1697
  %v1722 = vmul.f32 %v1721, %v1720
  %v1723 = vmul.f32 0.5, %v1722
  %v1724 = vsub.f32 1.5, %v1723
  %v1725 = vmul.f32 %v1720, %v1724
  %vm1726 = vweird.f32 %v1697
  %vm1727 = vweird.f32 %v1720
  %vm1728 = vmor %vm1726, %vm1727
  %v1729 = vsel %vm1728, %v1720, %v1725
  %v1730 = vrsqrt.pop %v1698
  %v1731 = vmul.f32 %v1730, %v1698
  %v1732 = vmul.f32 %v1731, %v1730
  %v1733 = vmul.f32 0.5, %v1732
  %v1734 = vsub.f32 1.5, %v1733
  %v1735 = vmul.f32 %v1730, %v1734
  %vm1736 = vweird.f32 %v1698
  %vm1737 = vweird.f32 %v1730
  %vm1738 = vmor %vm1736, %vm1737
  %v1739 = vsel %vm1738, %v1730, %v1735
  %v1740 = vrsqrt.pop %v1699
  %v1741 = vmul.f32 %v1740, %v1699
  %v1742 = vmul.f32 %v1741, %v1740
  %v1743 = vmul.f32 0.5, %v1742
  %v1744 = vsub.f32 1.5, %v1743
  %v1745 = vmul.f32 %v1740, %v1744
  %vm1746 = vweird.f32 %v1699
  %vm1747 = vweird.f32 %v1740
  %vm1748 = vmor %vm1746, %vm1747
  %v1749 = vsel %vm1748, %v1740, %v1745
  %v1750 = vrsqrt.pop %v1700
  %v1751 = vmul.f32 %v1750, %v1700
  %v1752 = vmul.f32 %v1751, %v1750
  %v1753 = vmul.f32 0.5, %v1752
  %v1754 = vsub.f32 1.5, %v1753
  %v1755 = vmul.f32 %v1750, %v1754
  %vm1756 = vweird.f32 %v1700
  %vm1757 = vweird.f32 %v1750
  %vm1758 = vmor %vm1756, %vm1757
  %v1759 = vsel %vm1758, %v1750, %v1755
  %v1760 = vrsqrt.pop %v1701
  %v1761 = vmul.f32 %v1760, %v1701
  %v1762 = vmul.f32 %v1761, %v1760
  %v1763 = vmul.f32 0.5, %v1762
  %v1764 = vsub.f32 1.5, %v1763
  %v1765 = vmul.f32 %v1760, %v1764
  %vm1766 = vweird.f32 %v1701
  %vm1767 = vweird.f32 %v1760
  %vm1768 = vmor %vm1766, %vm1767
  %v1769 = vsel %vm1768, %v1760, %v1765
  %v1770 = vrsqrt.pop %v1702
  %v1771 = vmul.f32 %v1770, %v1702
  %v1772 = vmul.f32 %v1771, %v1770
  %v1773 = vmul.f32 0.5, %v1772
  %v1774 = vsub.f32 1.5, %v1773
  %v1775 = vmul.f32 %v1770, %v1774
  %vm1776 = vweird.f32 %v1702
  %vm1777 = vweird.f32 %v1770
  %vm1778 = vmor %vm1776, %vm1777
  %v1779 = vsel %vm1778, %v1770, %v1775
  %v1780 = vrsqrt.pop %v1703
  %v1781 = vmul.f32 %v1780, %v1703
  %v1782 = vmul.f32 %v1781, %v1780
  %v1783 = vmul.f32 0.5, %v1782
  %v1784 = vsub.f32 1.5, %v1783
  %v1785 = vmul.f32 %v1780, %v1784
  %vm1786 = vweird.f32 %v1703
  %vm1787 = vweird.f32 %v1780
  %vm1788 = vmor %vm1786, %vm1787
  %v1789 = vsel %vm1788, %v1780, %v1785
  %v1790 = vrsqrt.pop %v1704
  %v1791 = vmul.f32 %v1790, %v1704
  %v1792 = vmul.f32 %v1791, %v1790
  %v1793 = vmul.f32 0.5, %v1792
  %v1794 = vsub.f32 1.5, %v1793
  %v1795 = vmul.f32 %v1790, %v1794
  %vm1796 = vweird.f32 %v1704
  %vm1797 = vweird.f32 %v1790
  %vm1798 = vmor %vm1796, %vm1797
  %v1799 = vsel %vm1798, %v1790, %v1795
  %v1800 = vrsqrt.pop %v1705
  %v1801 = vmul.f32 %v1800, %v1705
  %v1802 = vmul.f32 %v1801, %v1800
  %v1803 = vmul.f32 0.5, %v1802
  %v1804 = vsub.f32 1.5, %v1803
  %v1805 = vmul.f32 %v1800, %v1804
  %vm1806 = vweird.f32 %v1705
  %vm1807 = vweird.f32 %v1800
  %vm1808 = vmor %vm1806, %vm1807
  %v1809 = vsel %vm1808, %v1800, %v1805
  %v1810 = vrsqrt.pop %v1706
  %v1811 = vmul.f32 %v1810, %v1706
  %v1812 = vmul.f32 %v1811, %v1810
  %v1813 = vmul.f32 0.5, %v1812
  %v1814 = vsub.f32 1.5, %v1813
  %v1815 = vmul.f32 %v1810, %v1814
  %vm1816 = vweird.f32 %v1706
  %vm1817 = vweird.f32 %v1810
  %vm1818 = vmor %vm1816, %vm1817
  %v1819 = vsel %vm1818, %v1810, %v1815
  %v1820 = vrsqrt.pop %v1707
  %v1821 = vmul.f32 %v1820, %v1707
  %v1822 = vmul.f32 %v1821, %v1820
  %v1823 = vmul.f32 0.5, %v1822
  %v1824 = vsub.f32 1.5, %v1823
  %v1825 = vmul.f32 %v1820, %v1824
  %vm1826 = vweird.f32 %v1707
  %vm1827 = vweird.f32 %v1820
  %vm1828 = vmor %vm1826, %vm1827
  %v1829 = vsel %vm1828, %v1820, %v1825
  %v1830 = vrsqrt.pop %v1708
  %v1831 = vmul.f32 %v1830, %v1708
  %v1832 = vmul.f32 %v1831, %v1830
  %v1833 = vmul.f32 0.5, %v1832
  %v1834 = vsub.f32 1.5, %v1833
  %v1835 = vmul.f32 %v1830, %v1834
  %vm1836 = vweird.f32 %v1708
  %vm1837 = vweird.f32 %v1830
  %vm1838 = vmor %vm1836, %vm1837
  %v1839 = vsel %vm1838, %v1830, %v1835
  %v1840 = vrsqrt.pop %v1709
  %v1841 = vmul.f32 %v1840, %v1709
  %v1842 = vmul.f32 %v1841, %v1840
  %v1843 = vmul.f32 0.5, %v1842
  %v1844 = vsub.f32 1.5, %v1843
  %v1845 = vmul.f32 %v1840, %v1844
  %vm1846 = vweird.f32 %v1709
  %vm1847 = vweird.f32 %v1840
  %vm1848 = vmor %vm1846, %vm1847
  %v1849 = vsel %vm1848, %v1840, %v1845
  %v1850 = vmul.f32 %v1682, %v1719
  %v1851 = vmul.f32 %v1683, %v1729
  %v1852 = vmul.f32 %v1684, %v1739
  %v1853 = vmul.f32 %v1685, %v1749
  %v1854 = vmul.f32 %v1686, %v1759
  %v1855 = vmul.f32 %v1687, %v1769
  %v1856 = vmul.f32 %v1688, %v1779
  %v1857 = vmul.f32 %v1689, %v1789
  %v1858 = vmul.f32 %v1690, %v1799
  %v1859 = vmul.f32 %v1691, %v1809
  %v1860 = vmul.f32 %v1692, %v1819
  %v1861 = vmul.f32 %v1693, %v1829
  %v1862 = vmul.f32 %v1694, %v1839
  %v1863 = vmul.f32 %v1695, %v1849
  %v1864 = vld [vmem:[%s3 + $0x70] sm:$0xff]
  %v1865 = vld [vmem:[%s3 + $0x78] sm:$0xff]
  %v1866 = vld [vmem:[%s3 + $0x80] sm:$0xff]
  %v1867 = vld [vmem:[%s3 + $0x88] sm:$0xff]
  %v1868 = vld [vmem:[%s3 + $0x90] sm:$0xff]
  %v1869 = vld [vmem:[%s3 + $0x98] sm:$0xff]
  %v1870 = vld [vmem:[%s3 + $0xa0] sm:$0xff]
  %v1871 = vld [vmem:[%s3 + $0xa8] sm:$0xff]
  %v1872 = vld [vmem:[%s3 + $0xb0] sm:$0xff]
  %v1873 = vld [vmem:[%s3 + $0xb8] sm:$0xff]
  %v1874 = vld [vmem:[%s3 + $0xc0] sm:$0xff]
  %v1875 = vld [vmem:[%s3 + $0xc8] sm:$0xff]
  %v1876 = vld [vmem:[%s3 + $0xd0] sm:$0xff]
  %v1877 = vld [vmem:[%s3 + $0xd8] sm:$0xff]
  %v1878 = vmul.f32 %v1626, %v1850
  %v1879 = vmul.f32 %v1627, %v1851
  %v1880 = vmul.f32 %v1628, %v1852
  %v1881 = vmul.f32 %v1629, %v1853
  %v1882 = vmul.f32 %v1630, %v1854
  %v1883 = vmul.f32 %v1631, %v1855
  %v1884 = vmul.f32 %v1632, %v1856
  %v1885 = vmul.f32 %v1633, %v1857
  %v1886 = vmul.f32 %v1634, %v1858
  %v1887 = vmul.f32 %v1635, %v1859
  %v1888 = vmul.f32 %v1636, %v1860
  %v1889 = vmul.f32 %v1637, %v1861
  %v1890 = vmul.f32 %v1638, %v1862
  %v1891 = vmul.f32 %v1639, %v1863
  %v1892 = vsub.f32 %v1864, %v1878
  %v1893 = vsub.f32 %v1865, %v1879
  %v1894 = vsub.f32 %v1866, %v1880
  %v1895 = vsub.f32 %v1867, %v1881
  %v1896 = vsub.f32 %v1868, %v1882
  %v1897 = vsub.f32 %v1869, %v1883
  %v1898 = vsub.f32 %v1870, %v1884
  %v1899 = vsub.f32 %v1871, %v1885
  %v1900 = vsub.f32 %v1872, %v1886
  %v1901 = vsub.f32 %v1873, %v1887
  %v1902 = vsub.f32 %v1874, %v1888
  %v1903 = vsub.f32 %v1875, %v1889
  %v1904 = vsub.f32 %v1876, %v1890
  %v1905 = vsub.f32 %v1877, %v1891
  %1907 = vset.pattern.permute.xlu0 0
  %1908 = vperm.xlu0 %1907, %v1850
  %v1909 = vpop.permute.xlu0 %1908
  %1912 = vset.pattern.permute.xlu0 0
  %1913 = vperm.xlu0 %1912, %v1851
  %v1914 = vpop.permute.xlu0 %1913
  %1917 = vset.pattern.permute.xlu0 0
  %1918 = vperm.xlu0 %1917, %v1852
  %v1919 = vpop.permute.xlu0 %1918
  %1922 = vset.pattern.permute.xlu0 0
  %1923 = vperm.xlu0 %1922, %v1853
  %v1924 = vpop.permute.xlu0 %1923
  %1927 = vset.pattern.permute.xlu0 0
  %1928 = vperm.xlu0 %1927, %v1854
  %v1929 = vpop.permute.xlu0 %1928
  %1932 = vset.pattern.permute.xlu0 0
  %1933 = vperm.xlu0 %1932, %v1855
  %v1934 = vpop.permute.xlu0 %1933
  %1937 = vset.pattern.permute.xlu0 0
  %1938 = vperm.xlu0 %1937, %v1856
  %v1939 = vpop.permute.xlu0 %1938
  %1942 = vset.pattern.permute.xlu0 0
  %1943 = vperm.xlu0 %1942, %v1857
  %v1944 = vpop.permute.xlu0 %1943
  %1947 = vset.pattern.permute.xlu0 0
  %1948 = vperm.xlu0 %1947, %v1858
  %v1949 = vpop.permute.xlu0 %1948
  %1952 = vset.pattern.permute.xlu0 0
  %1953 = vperm.xlu0 %1952, %v1859
  %v1954 = vpop.permute.xlu0 %1953
  %1957 = vset.pattern.permute.xlu0 0
  %1958 = vperm.xlu0 %1957, %v1860
  %v1959 = vpop.permute.xlu0 %1958
  %1962 = vset.pattern.permute.xlu0 0
  %1963 = vperm.xlu0 %1962, %v1861
  %v1964 = vpop.permute.xlu0 %1963
  %1967 = vset.pattern.permute.xlu0 0
  %1968 = vperm.xlu0 %1967, %v1862
  %v1969 = vpop.permute.xlu0 %1968
  %1972 = vset.pattern.permute.xlu0 0
  %1973 = vperm.xlu0 %1972, %v1863
  %v1974 = vpop.permute.xlu0 %1973
  %v1976 = vmul.f32 %v1320, %v1909
  %v1977 = vmul.f32 %v1452, %v1909
  %v1978 = vmul.f32 %v1322, %v1914
  %v1979 = vmul.f32 %v1454, %v1914
  %v1980 = vmul.f32 %v1325, %v1919
  %v1981 = vmul.f32 %v1457, %v1919
  %v1982 = vmul.f32 %v1327, %v1924
  %v1983 = vmul.f32 %v1459, %v1924
  %v1984 = vmul.f32 %v1330, %v1929
  %v1985 = vmul.f32 %v1462, %v1929
  %v1986 = vmul.f32 %v1332, %v1934
  %v1987 = vmul.f32 %v1464, %v1934
  %v1988 = vmul.f32 %v1335, %v1939
  %v1989 = vmul.f32 %v1467, %v1939
  %v1990 = vmul.f32 %v1337, %v1944
  %v1991 = vmul.f32 %v1469, %v1944
  %v1992 = vmul.f32 %v1340, %v1949
  %v1993 = vmul.f32 %v1472, %v1949
  %v1994 = vmul.f32 %v1342, %v1954
  %v1995 = vmul.f32 %v1474, %v1954
  %v1996 = vmul.f32 %v1345, %v1959
  %v1997 = vmul.f32 %v1477, %v1959
  %v1998 = vmul.f32 %v1347, %v1964
  %v1999 = vmul.f32 %v1479, %v1964
  %v2000 = vmul.f32 %v1350, %v1969
  %v2001 = vmul.f32 %v1482, %v1969
  %v2002 = vmul.f32 %v1352, %v1974
  %v2003 = vmul.f32 %v1484, %v1974
  %2005 = vset.pattern.permute.xlu0 0
  %2006 = vperm.xlu0 %2005, %v1892
  %v2007 = vpop.permute.xlu0 %2006
  %2010 = vset.pattern.permute.xlu0 0
  %2011 = vperm.xlu0 %2010, %v1893
  %v2012 = vpop.permute.xlu0 %2011
  %2015 = vset.pattern.permute.xlu0 0
  %2016 = vperm.xlu0 %2015, %v1894
  %v2017 = vpop.permute.xlu0 %2016
  %2020 = vset.pattern.permute.xlu0 0
  %2021 = vperm.xlu0 %2020, %v1895
  %v2022 = vpop.permute.xlu0 %2021
  %2025 = vset.pattern.permute.xlu0 0
  %2026 = vperm.xlu0 %2025, %v1896
  %v2027 = vpop.permute.xlu0 %2026
  %2030 = vset.pattern.permute.xlu0 0
  %2031 = vperm.xlu0 %2030, %v1897
  %v2032 = vpop.permute.xlu0 %2031
  %2035 = vset.pattern.permute.xlu0 0
  %2036 = vperm.xlu0 %2035, %v1898
  %v2037 = vpop.permute.xlu0 %2036
  %2040 = vset.pattern.permute.xlu0 0
  %2041 = vperm.xlu0 %2040, %v1899
  %v2042 = vpop.permute.xlu0 %2041
  %2045 = vset.pattern.permute.xlu0 0
  %2046 = vperm.xlu0 %2045, %v1900
  %v2047 = vpop.permute.xlu0 %2046
  %2050 = vset.pattern.permute.xlu0 0
  %2051 = vperm.xlu0 %2050, %v1901
  %v2052 = vpop.permute.xlu0 %2051
  %2055 = vset.pattern.permute.xlu0 0
  %2056 = vperm.xlu0 %2055, %v1902
  %v2057 = vpop.permute.xlu0 %2056
  %2060 = vset.pattern.permute.xlu0 0
  %2061 = vperm.xlu0 %2060, %v1903
  %v2062 = vpop.permute.xlu0 %2061
  %2065 = vset.pattern.permute.xlu0 0
  %2066 = vperm.xlu0 %2065, %v1904
  %v2067 = vpop.permute.xlu0 %2066
  %2070 = vset.pattern.permute.xlu0 0
  %2071 = vperm.xlu0 %2070, %v1905
  %v2072 = vpop.permute.xlu0 %2071
  %v2074 = vadd.f32 %v1976, %v2007
  %v2075 = vadd.f32 %v1977, %v2007
  %v2076 = vadd.f32 %v1978, %v2012
  %v2077 = vadd.f32 %v1979, %v2012
  %v2078 = vadd.f32 %v1980, %v2017
  %v2079 = vadd.f32 %v1981, %v2017
  %v2080 = vadd.f32 %v1982, %v2022
  %v2081 = vadd.f32 %v1983, %v2022
  %v2082 = vadd.f32 %v1984, %v2027
  %v2083 = vadd.f32 %v1985, %v2027
  %v2084 = vadd.f32 %v1986, %v2032
  %v2085 = vadd.f32 %v1987, %v2032
  %v2086 = vadd.f32 %v1988, %v2037
  %v2087 = vadd.f32 %v1989, %v2037
  %v2088 = vadd.f32 %v1990, %v2042
  %v2089 = vadd.f32 %v1991, %v2042
  %v2090 = vadd.f32 %v1992, %v2047
  %v2091 = vadd.f32 %v1993, %v2047
  %v2092 = vadd.f32 %v1994, %v2052
  %v2093 = vadd.f32 %v1995, %v2052
  %v2094 = vadd.f32 %v1996, %v2057
  %v2095 = vadd.f32 %v1997, %v2057
  %v2096 = vadd.f32 %v1998, %v2062
  %v2097 = vadd.f32 %v1999, %v2062
  %v2098 = vadd.f32 %v2000, %v2067
  %v2099 = vadd.f32 %v2001, %v2067
  %v2100 = vadd.f32 %v2002, %v2072
  %v2101 = vadd.f32 %v2003, %v2072
  %2102 = vst [vmem:[%s4 + $0xe0] sm:$0xff] %v2074
  %2103 = vst.msk [vmem:[%s4 + $0xe8] sm:$0xff] %vm493, %v2075
  %2104 = vst [vmem:[%s4 + $0xf0] sm:$0xff] %v2076
  %2105 = vst.msk [vmem:[%s4 + $0xf8] sm:$0xff] %vm493, %v2077
  %2106 = vst [vmem:[%s4 + $0x100] sm:$0xff] %v2078
  %2107 = vst.msk [vmem:[%s4 + $0x108] sm:$0xff] %vm493, %v2079
  %2108 = vst [vmem:[%s4 + $0x110] sm:$0xff] %v2080
  %2109 = vst.msk [vmem:[%s4 + $0x118] sm:$0xff] %vm493, %v2081
  %2110 = vst [vmem:[%s4 + $0x120] sm:$0xff] %v2082
  %2111 = vst.msk [vmem:[%s4 + $0x128] sm:$0xff] %vm493, %v2083
  %2112 = vst [vmem:[%s4 + $0x130] sm:$0xff] %v2084
  %2113 = vst.msk [vmem:[%s4 + $0x138] sm:$0xff] %vm493, %v2085
  %2114 = vst [vmem:[%s4 + $0x140] sm:$0xff] %v2086
  %2115 = vst.msk [vmem:[%s4 + $0x148] sm:$0xff] %vm493, %v2087
  %2116 = vst [vmem:[%s4 + $0x150] sm:$0xff] %v2088
  %2117 = vst.msk [vmem:[%s4 + $0x158] sm:$0xff] %vm493, %v2089
  %2118 = vst [vmem:[%s4 + $0x160] sm:$0xff] %v2090
  %2119 = vst.msk [vmem:[%s4 + $0x168] sm:$0xff] %vm493, %v2091
  %2120 = vst [vmem:[%s4 + $0x170] sm:$0xff] %v2092
  %2121 = vst.msk [vmem:[%s4 + $0x178] sm:$0xff] %vm493, %v2093
  %2122 = vst [vmem:[%s4 + $0x180] sm:$0xff] %v2094
  %2123 = vst.msk [vmem:[%s4 + $0x188] sm:$0xff] %vm493, %v2095
  %2124 = vst [vmem:[%s4 + $0x190] sm:$0xff] %v2096
  %2125 = vst.msk [vmem:[%s4 + $0x198] sm:$0xff] %vm493, %v2097
  %2126 = vst [vmem:[%s4 + $0x1a0] sm:$0xff] %v2098
  %2127 = vst.msk [vmem:[%s4 + $0x1a8] sm:$0xff] %vm493, %v2099
  %2128 = vst [vmem:[%s4 + $0x1b0] sm:$0xff] %v2100
  %2129 = vst.msk [vmem:[%s4 + $0x1b8] sm:$0xff] %vm493, %v2101
  %v2130 = vld [vmem:[%s0 + $0x2a0] sm:$0xff]
  %v2131 = vld [vmem:[%s0 + $0x2a8] sm:$0xff]
  %v2132 = vld [vmem:[%s0 + $0x2b0] sm:$0xff]
  %v2133 = vld [vmem:[%s0 + $0x2b8] sm:$0xff]
  %v2134 = vld [vmem:[%s0 + $0x2c0] sm:$0xff]
  %v2135 = vld [vmem:[%s0 + $0x2c8] sm:$0xff]
  %v2136 = vld [vmem:[%s0 + $0x2d0] sm:$0xff]
  %v2137 = vld [vmem:[%s0 + $0x2d8] sm:$0xff]
  %v2138 = vld [vmem:[%s0 + $0x2e0] sm:$0xff]
  %v2139 = vld [vmem:[%s0 + $0x2e8] sm:$0xff]
  %v2140 = vld [vmem:[%s0 + $0x2f0] sm:$0xff]
  %v2141 = vld [vmem:[%s0 + $0x2f8] sm:$0xff]
  %v2142 = vld [vmem:[%s0 + $0x300] sm:$0xff]
  %v2143 = vld [vmem:[%s0 + $0x308] sm:$0xff]
  %v2144 = vld [vmem:[%s0 + $0x310] sm:$0xff]
  %v2145 = vld [vmem:[%s0 + $0x318] sm:$0xff]
  %v2146 = vld [vmem:[%s0 + $0x320] sm:$0xff]
  %v2147 = vld [vmem:[%s0 + $0x328] sm:$0xff]
  %v2148 = vld [vmem:[%s0 + $0x330] sm:$0xff]
  %v2149 = vld [vmem:[%s0 + $0x338] sm:$0xff]
  %v2150 = vld [vmem:[%s0 + $0x340] sm:$0xff]
  %v2151 = vld [vmem:[%s0 + $0x348] sm:$0xff]
  %v2152 = vld [vmem:[%s0 + $0x350] sm:$0xff]
  %v2153 = vld [vmem:[%s0 + $0x358] sm:$0xff]
  %v2154 = vld [vmem:[%s0 + $0x360] sm:$0xff]
  %v2155 = vld [vmem:[%s0 + $0x368] sm:$0xff]
  %v2156 = vld [vmem:[%s0 + $0x370] sm:$0xff]
  %v2157 = vld [vmem:[%s0 + $0x378] sm:$0xff]
  %v2158 = vld [vmem:[%s0 + $0x380] sm:$0xff]
  %v2159 = vld [vmem:[%s0 + $0x388] sm:$0xff]
  %v2160 = vld [vmem:[%s0 + $0x390] sm:$0xff]
  %v2161 = vld [vmem:[%s0 + $0x398] sm:$0xff]
  %v2162 = vld [vmem:[%s0 + $0x3a0] sm:$0xff]
  %v2163 = vld [vmem:[%s0 + $0x3a8] sm:$0xff]
  %v2164 = vld [vmem:[%s0 + $0x3b0] sm:$0xff]
  %v2165 = vld [vmem:[%s0 + $0x3b8] sm:$0xff]
  %v2166 = vld [vmem:[%s0 + $0x3c0] sm:$0xff]
  %v2167 = vld [vmem:[%s0 + $0x3c8] sm:$0xff]
  %v2168 = vld [vmem:[%s0 + $0x3d0] sm:$0xff]
  %v2169 = vld [vmem:[%s0 + $0x3d8] sm:$0xff]
  %v2170 = vld [vmem:[%s0 + $0x3e0] sm:$0xff]
  %v2171 = vld [vmem:[%s0 + $0x3e8] sm:$0xff]
  %v2172 = vpack.c.bf16 %v2133, %v2130
  %v2173 = vpack.c.bf16 %v2134, %v2131
  %v2174 = vpack.c.bf16 %v2135, %v2132
  %v2175 = vpack.c.bf16 %v2139, %v2136
  %v2176 = vpack.c.bf16 %v2140, %v2137
  %v2177 = vpack.c.bf16 %v2141, %v2138
  %v2178 = vpack.c.bf16 %v2145, %v2142
  %v2179 = vpack.c.bf16 %v2146, %v2143
  %v2180 = vpack.c.bf16 %v2147, %v2144
  %v2181 = vpack.c.bf16 %v2151, %v2148
  %v2182 = vpack.c.bf16 %v2152, %v2149
  %v2183 = vpack.c.bf16 %v2153, %v2150
  %v2184 = vpack.c.bf16 %v2157, %v2154
  %v2185 = vpack.c.bf16 %v2158, %v2155
  %v2186 = vpack.c.bf16 %v2159, %v2156
  %v2187 = vpack.c.bf16 %v2163, %v2160
  %v2188 = vpack.c.bf16 %v2164, %v2161
  %v2189 = vpack.c.bf16 %v2165, %v2162
  %v2190 = vpack.c.bf16 %v2169, %v2166
  %v2191 = vpack.c.bf16 %v2170, %v2167
  %v2192 = vpack.c.bf16 %v2171, %v2168
  %v2194 = vsel %vm207, %v2174, 0
  %v2197 = vsel %vm207, %v2177, 0
  %v2200 = vsel %vm207, %v2180, 0
  %v2203 = vsel %vm207, %v2183, 0
  %v2206 = vsel %vm207, %v2186, 0
  %v2209 = vsel %vm207, %v2189, 0
  %v2212 = vsel %vm207, %v2192, 0
  %2214 = vmatpush.bf16.msra.mxu0 %v116
  %2215 = vmatpush.bf16.msra.mxu0 %v114
  %2216 = vmatpush.bf16.msra.mxu0 %v112
  %2217 = vmatpush.bf16.msra.mxu0 %v110
  %2218 = vmatpush.bf16.msra.mxu0 %v108
  %2219 = vmatpush.bf16.msra.mxu0 %v106
  %2220 = vmatpush.bf16.msra.mxu0 %v104
  %2221 = vmatpush.bf16.msra.mxu0 %v102
  %2222 = vmatmul.bf16.gmra.mxu0 %v2172
  %v2223 = vpop.f32.mrf.mxu0
  %v2224 = vadd.f32 0.0, %v2223
  %v2225 = vpop.f32.mrf.mxu0
  %v2226 = vadd.f32 0.0, %v2225
  %2227 = vmatmul.bf16.gmra.mxu0 %v2175
  %v2228 = vpop.f32.mrf.mxu0
  %v2229 = vadd.f32 0.0, %v2228
  %v2230 = vpop.f32.mrf.mxu0
  %v2231 = vadd.f32 0.0, %v2230
  %2232 = vmatmul.bf16.gmra.mxu0 %v2178
  %v2233 = vpop.f32.mrf.mxu0
  %v2234 = vadd.f32 0.0, %v2233
  %v2235 = vpop.f32.mrf.mxu0
  %v2236 = vadd.f32 0.0, %v2235
  %2237 = vmatmul.bf16.gmra.mxu0 %v2181
  %v2238 = vpop.f32.mrf.mxu0
  %v2239 = vadd.f32 0.0, %v2238
  %v2240 = vpop.f32.mrf.mxu0
  %v2241 = vadd.f32 0.0, %v2240
  %2242 = vmatmul.bf16.gmra.mxu0 %v2184
  %v2243 = vpop.f32.mrf.mxu0
  %v2244 = vadd.f32 0.0, %v2243
  %v2245 = vpop.f32.mrf.mxu0
  %v2246 = vadd.f32 0.0, %v2245
  %2247 = vmatmul.bf16.gmra.mxu0 %v2187
  %v2248 = vpop.f32.mrf.mxu0
  %v2249 = vadd.f32 0.0, %v2248
  %v2250 = vpop.f32.mrf.mxu0
  %v2251 = vadd.f32 0.0, %v2250
  %2252 = vmatmul.bf16.gmra.mxu0 %v2190
  %v2253 = vpop.f32.mrf.mxu0
  %v2254 = vadd.f32 0.0, %v2253
  %v2255 = vpop.f32.mrf.mxu0
  %v2256 = vadd.f32 0.0, %v2255
  %2257 = vdwg.mxu0
  %2258 = vmatpush.bf16.msra.mxu0 %v132
  %2259 = vmatpush.bf16.msra.mxu0 %v130
  %2260 = vmatpush.bf16.msra.mxu0 %v128
  %2261 = vmatpush.bf16.msra.mxu0 %v126
  %2262 = vmatpush.bf16.msra.mxu0 %v124
  %2263 = vmatpush.bf16.msra.mxu0 %v122
  %2264 = vmatpush.bf16.msra.mxu0 %v120
  %2265 = vmatpush.bf16.msra.mxu0 %v118
  %2266 = vmatmul.bf16.gmra.mxu0 %v2173
  %v2267 = vpop.f32.mrf.mxu0
  %v2268 = vadd.f32 %v2224, %v2267
  %v2269 = vpop.f32.mrf.mxu0
  %v2270 = vadd.f32 %v2226, %v2269
  %2271 = vmatmul.bf16.gmra.mxu0 %v2176
  %v2272 = vpop.f32.mrf.mxu0
  %v2273 = vadd.f32 %v2229, %v2272
  %v2274 = vpop.f32.mrf.mxu0
  %v2275 = vadd.f32 %v2231, %v2274
  %2276 = vmatmul.bf16.gmra.mxu0 %v2179
  %v2277 = vpop.f32.mrf.mxu0
  %v2278 = vadd.f32 %v2234, %v2277
  %v2279 = vpop.f32.mrf.mxu0
  %v2280 = vadd.f32 %v2236, %v2279
  %2281 = vmatmul.bf16.gmra.mxu0 %v2182
  %v2282 = vpop.f32.mrf.mxu0
  %v2283 = vadd.f32 %v2239, %v2282
  %v2284 = vpop.f32.mrf.mxu0
  %v2285 = vadd.f32 %v2241, %v2284
  %2286 = vmatmul.bf16.gmra.mxu0 %v2185
  %v2287 = vpop.f32.mrf.mxu0
  %v2288 = vadd.f32 %v2244, %v2287
  %v2289 = vpop.f32.mrf.mxu0
  %v2290 = vadd.f32 %v2246, %v2289
  %2291 = vmatmul.bf16.gmra.mxu0 %v2188
  %v2292 = vpop.f32.mrf.mxu0
  %v2293 = vadd.f32 %v2249, %v2292
  %v2294 = vpop.f32.mrf.mxu0
  %v2295 = vadd.f32 %v2251, %v2294
  %2296 = vmatmul.bf16.gmra.mxu0 %v2191
  %v2297 = vpop.f32.mrf.mxu0
  %v2298 = vadd.f32 %v2254, %v2297
  %v2299 = vpop.f32.mrf.mxu0
  %v2300 = vadd.f32 %v2256, %v2299
  %2301 = vdwg.mxu0
  %2302 = vmatpush.bf16.msra.mxu0 0
  %2303 = vmatpush.bf16.msra.mxu0 0
  %2304 = vmatpush.bf16.msra.mxu0 0
  %2305 = vmatpush.bf16.msra.mxu0 %v142
  %2306 = vmatpush.bf16.msra.mxu0 %v140
  %2307 = vmatpush.bf16.msra.mxu0 %v138
  %2308 = vmatpush.bf16.msra.mxu0 %v136
  %2309 = vmatpush.bf16.msra.mxu0 %v134
  %2310 = vmatmul.bf16.gmra.mxu0 %v2194
  %v2311 = vpop.f32.mrf.mxu0
  %v2312 = vadd.f32 %v2268, %v2311
  %v2313 = vpop.f32.mrf.mxu0
  %v2314 = vadd.f32 %v2270, %v2313
  %2315 = vmatmul.bf16.gmra.mxu0 %v2197
  %v2316 = vpop.f32.mrf.mxu0
  %v2317 = vadd.f32 %v2273, %v2316
  %v2318 = vpop.f32.mrf.mxu0
  %v2319 = vadd.f32 %v2275, %v2318
  %2320 = vmatmul.bf16.gmra.mxu0 %v2200
  %v2321 = vpop.f32.mrf.mxu0
  %v2322 = vadd.f32 %v2278, %v2321
  %v2323 = vpop.f32.mrf.mxu0
  %v2324 = vadd.f32 %v2280, %v2323
  %2325 = vmatmul.bf16.gmra.mxu0 %v2203
  %v2326 = vpop.f32.mrf.mxu0
  %v2327 = vadd.f32 %v2283, %v2326
  %v2328 = vpop.f32.mrf.mxu0
  %v2329 = vadd.f32 %v2285, %v2328
  %2330 = vmatmul.bf16.gmra.mxu0 %v2206
  %v2331 = vpop.f32.mrf.mxu0
  %v2332 = vadd.f32 %v2288, %v2331
  %v2333 = vpop.f32.mrf.mxu0
  %v2334 = vadd.f32 %v2290, %v2333
  %2335 = vmatmul.bf16.gmra.mxu0 %v2209
  %v2336 = vpop.f32.mrf.mxu0
  %v2337 = vadd.f32 %v2293, %v2336
  %v2338 = vpop.f32.mrf.mxu0
  %v2339 = vadd.f32 %v2295, %v2338
  %2340 = vmatmul.bf16.gmra.mxu0 %v2212
  %v2341 = vpop.f32.mrf.mxu0
  %v2342 = vadd.f32 %v2298, %v2341
  %v2343 = vpop.f32.mrf.mxu0
  %v2344 = vadd.f32 %v2300, %v2343
  %2345 = vdwg.mxu0
  %2346 = vmatpush.bf16.msra.mxu0 %v117
  %2347 = vmatpush.bf16.msra.mxu0 %v115
  %2348 = vmatpush.bf16.msra.mxu0 %v113
  %2349 = vmatpush.bf16.msra.mxu0 %v111
  %2350 = vmatpush.bf16.msra.mxu0 %v109
  %2351 = vmatpush.bf16.msra.mxu0 %v107
  %2352 = vmatpush.bf16.msra.mxu0 %v105
  %2353 = vmatpush.bf16.msra.mxu0 %v103
  %2354 = vmatmul.bf16.gmra.mxu0 %v2172
  %v2355 = vpop.f32.mrf.mxu0
  %v2356 = vadd.f32 0.0, %v2355
  %v2357 = vpop.f32.mrf.mxu0
  %v2358 = vadd.f32 0.0, %v2357
  %2359 = vmatmul.bf16.gmra.mxu0 %v2175
  %v2360 = vpop.f32.mrf.mxu0
  %v2361 = vadd.f32 0.0, %v2360
  %v2362 = vpop.f32.mrf.mxu0
  %v2363 = vadd.f32 0.0, %v2362
  %2364 = vmatmul.bf16.gmra.mxu0 %v2178
  %v2365 = vpop.f32.mrf.mxu0
  %v2366 = vadd.f32 0.0, %v2365
  %v2367 = vpop.f32.mrf.mxu0
  %v2368 = vadd.f32 0.0, %v2367
  %2369 = vmatmul.bf16.gmra.mxu0 %v2181
  %v2370 = vpop.f32.mrf.mxu0
  %v2371 = vadd.f32 0.0, %v2370
  %v2372 = vpop.f32.mrf.mxu0
  %v2373 = vadd.f32 0.0, %v2372
  %2374 = vmatmul.bf16.gmra.mxu0 %v2184
  %v2375 = vpop.f32.mrf.mxu0
  %v2376 = vadd.f32 0.0, %v2375
  %v2377 = vpop.f32.mrf.mxu0
  %v2378 = vadd.f32 0.0, %v2377
  %2379 = vmatmul.bf16.gmra.mxu0 %v2187
  %v2380 = vpop.f32.mrf.mxu0
  %v2381 = vadd.f32 0.0, %v2380
  %v2382 = vpop.f32.mrf.mxu0
  %v2383 = vadd.f32 0.0, %v2382
  %2384 = vmatmul.bf16.gmra.mxu0 %v2190
  %v2385 = vpop.f32.mrf.mxu0
  %v2386 = vadd.f32 0.0, %v2385
  %v2387 = vpop.f32.mrf.mxu0
  %v2388 = vadd.f32 0.0, %v2387
  %2389 = vdwg.mxu0
  %2390 = vmatpush.bf16.msra.mxu0 %v133
  %2391 = vmatpush.bf16.msra.mxu0 %v131
  %2392 = vmatpush.bf16.msra.mxu0 %v129
  %2393 = vmatpush.bf16.msra.mxu0 %v127
  %2394 = vmatpush.bf16.msra.mxu0 %v125
  %2395 = vmatpush.bf16.msra.mxu0 %v123
  %2396 = vmatpush.bf16.msra.mxu0 %v121
  %2397 = vmatpush.bf16.msra.mxu0 %v119
  %2398 = vmatmul.bf16.gmra.mxu0 %v2173
  %v2399 = vpop.f32.mrf.mxu0
  %v2400 = vadd.f32 %v2356, %v2399
  %v2401 = vpop.f32.mrf.mxu0
  %v2402 = vadd.f32 %v2358, %v2401
  %2403 = vmatmul.bf16.gmra.mxu0 %v2176
  %v2404 = vpop.f32.mrf.mxu0
  %v2405 = vadd.f32 %v2361, %v2404
  %v2406 = vpop.f32.mrf.mxu0
  %v2407 = vadd.f32 %v2363, %v2406
  %2408 = vmatmul.bf16.gmra.mxu0 %v2179
  %v2409 = vpop.f32.mrf.mxu0
  %v2410 = vadd.f32 %v2366, %v2409
  %v2411 = vpop.f32.mrf.mxu0
  %v2412 = vadd.f32 %v2368, %v2411
  %2413 = vmatmul.bf16.gmra.mxu0 %v2182
  %v2414 = vpop.f32.mrf.mxu0
  %v2415 = vadd.f32 %v2371, %v2414
  %v2416 = vpop.f32.mrf.mxu0
  %v2417 = vadd.f32 %v2373, %v2416
  %2418 = vmatmul.bf16.gmra.mxu0 %v2185
  %v2419 = vpop.f32.mrf.mxu0
  %v2420 = vadd.f32 %v2376, %v2419
  %v2421 = vpop.f32.mrf.mxu0
  %v2422 = vadd.f32 %v2378, %v2421
  %2423 = vmatmul.bf16.gmra.mxu0 %v2188
  %v2424 = vpop.f32.mrf.mxu0
  %v2425 = vadd.f32 %v2381, %v2424
  %v2426 = vpop.f32.mrf.mxu0
  %v2427 = vadd.f32 %v2383, %v2426
  %2428 = vmatmul.bf16.gmra.mxu0 %v2191
  %v2429 = vpop.f32.mrf.mxu0
  %v2430 = vadd.f32 %v2386, %v2429
  %v2431 = vpop.f32.mrf.mxu0
  %v2432 = vadd.f32 %v2388, %v2431
  %2433 = vdwg.mxu0
  %2434 = vmatpush.bf16.msra.mxu0 0
  %2435 = vmatpush.bf16.msra.mxu0 0
  %2436 = vmatpush.bf16.msra.mxu0 0
  %2437 = vmatpush.bf16.msra.mxu0 %v143
  %2438 = vmatpush.bf16.msra.mxu0 %v141
  %2439 = vmatpush.bf16.msra.mxu0 %v139
  %2440 = vmatpush.bf16.msra.mxu0 %v137
  %2441 = vmatpush.bf16.msra.mxu0 %v135
  %2442 = vmatmul.bf16.gmra.mxu0 %v2194
  %v2443 = vpop.f32.mrf.mxu0
  %v2444 = vadd.f32 %v2400, %v2443
  %v2445 = vpop.f32.mrf.mxu0
  %v2446 = vadd.f32 %v2402, %v2445
  %2447 = vmatmul.bf16.gmra.mxu0 %v2197
  %v2448 = vpop.f32.mrf.mxu0
  %v2449 = vadd.f32 %v2405, %v2448
  %v2450 = vpop.f32.mrf.mxu0
  %v2451 = vadd.f32 %v2407, %v2450
  %2452 = vmatmul.bf16.gmra.mxu0 %v2200
  %v2453 = vpop.f32.mrf.mxu0
  %v2454 = vadd.f32 %v2410, %v2453
  %v2455 = vpop.f32.mrf.mxu0
  %v2456 = vadd.f32 %v2412, %v2455
  %2457 = vmatmul.bf16.gmra.mxu0 %v2203
  %v2458 = vpop.f32.mrf.mxu0
  %v2459 = vadd.f32 %v2415, %v2458
  %v2460 = vpop.f32.mrf.mxu0
  %v2461 = vadd.f32 %v2417, %v2460
  %2462 = vmatmul.bf16.gmra.mxu0 %v2206
  %v2463 = vpop.f32.mrf.mxu0
  %v2464 = vadd.f32 %v2420, %v2463
  %v2465 = vpop.f32.mrf.mxu0
  %v2466 = vadd.f32 %v2422, %v2465
  %2467 = vmatmul.bf16.gmra.mxu0 %v2209
  %v2468 = vpop.f32.mrf.mxu0
  %v2469 = vadd.f32 %v2425, %v2468
  %v2470 = vpop.f32.mrf.mxu0
  %v2471 = vadd.f32 %v2427, %v2470
  %2472 = vmatmul.bf16.gmra.mxu0 %v2212
  %v2473 = vpop.f32.mrf.mxu0
  %v2474 = vadd.f32 %v2430, %v2473
  %v2475 = vpop.f32.mrf.mxu0
  %v2476 = vadd.f32 %v2432, %v2475
  %2477 = vdwg.mxu0
  %v2478 = vsel %vm493, %v2444, 0.0
  %v2479 = vadd.f32 %v2312, %v2478
  %2480 = vadd.xlane.f32.xlu0 %v2479
  %v2481 = vpop.xlane.xlu0 %2480
  %v2482 = vsel %vm493, %v2446, 0.0
  %v2483 = vadd.f32 %v2314, %v2482
  %2484 = vadd.xlane.f32.xlu0 %v2483
  %v2485 = vpop.xlane.xlu0 %2484
  %v2486 = vsel %vm493, %v2449, 0.0
  %v2487 = vadd.f32 %v2317, %v2486
  %2488 = vadd.xlane.f32.xlu0 %v2487
  %v2489 = vpop.xlane.xlu0 %2488
  %v2490 = vsel %vm493, %v2451, 0.0
  %v2491 = vadd.f32 %v2319, %v2490
  %2492 = vadd.xlane.f32.xlu0 %v2491
  %v2493 = vpop.xlane.xlu0 %2492
  %v2494 = vsel %vm493, %v2454, 0.0
  %v2495 = vadd.f32 %v2322, %v2494
  %2496 = vadd.xlane.f32.xlu0 %v2495
  %v2497 = vpop.xlane.xlu0 %2496
  %v2498 = vsel %vm493, %v2456, 0.0
  %v2499 = vadd.f32 %v2324, %v2498
  %2500 = vadd.xlane.f32.xlu0 %v2499
  %v2501 = vpop.xlane.xlu0 %2500
  %v2502 = vsel %vm493, %v2459, 0.0
  %v2503 = vadd.f32 %v2327, %v2502
  %2504 = vadd.xlane.f32.xlu0 %v2503
  %v2505 = vpop.xlane.xlu0 %2504
  %v2506 = vsel %vm493, %v2461, 0.0
  %v2507 = vadd.f32 %v2329, %v2506
  %2508 = vadd.xlane.f32.xlu0 %v2507
  %v2509 = vpop.xlane.xlu0 %2508
  %v2510 = vsel %vm493, %v2464, 0.0
  %v2511 = vadd.f32 %v2332, %v2510
  %2512 = vadd.xlane.f32.xlu0 %v2511
  %v2513 = vpop.xlane.xlu0 %2512
  %v2514 = vsel %vm493, %v2466, 0.0
  %v2515 = vadd.f32 %v2334, %v2514
  %2516 = vadd.xlane.f32.xlu0 %v2515
  %v2517 = vpop.xlane.xlu0 %2516
  %v2518 = vsel %vm493, %v2469, 0.0
  %v2519 = vadd.f32 %v2337, %v2518
  %2520 = vadd.xlane.f32.xlu0 %v2519
  %v2521 = vpop.xlane.xlu0 %2520
  %v2522 = vsel %vm493, %v2471, 0.0
  %v2523 = vadd.f32 %v2339, %v2522
  %2524 = vadd.xlane.f32.xlu0 %v2523
  %v2525 = vpop.xlane.xlu0 %2524
  %v2526 = vsel %vm493, %v2474, 0.0
  %v2527 = vadd.f32 %v2342, %v2526
  %2528 = vadd.xlane.f32.xlu0 %v2527
  %v2529 = vpop.xlane.xlu0 %2528
  %v2530 = vsel %vm493, %v2476, 0.0
  %v2531 = vadd.f32 %v2344, %v2530
  %2532 = vadd.xlane.f32.xlu0 %v2531
  %v2533 = vpop.xlane.xlu0 %2532
  %v2534 = vmul.f32 %v2312, %v2312
  %v2535 = vmul.f32 %v2444, %v2444
  %v2536 = vmul.f32 %v2314, %v2314
  %v2537 = vmul.f32 %v2446, %v2446
  %v2538 = vmul.f32 %v2317, %v2317
  %v2539 = vmul.f32 %v2449, %v2449
  %v2540 = vmul.f32 %v2319, %v2319
  %v2541 = vmul.f32 %v2451, %v2451
  %v2542 = vmul.f32 %v2322, %v2322
  %v2543 = vmul.f32 %v2454, %v2454
  %v2544 = vmul.f32 %v2324, %v2324
  %v2545 = vmul.f32 %v2456, %v2456
  %v2546 = vmul.f32 %v2327, %v2327
  %v2547 = vmul.f32 %v2459, %v2459
  %v2548 = vmul.f32 %v2329, %v2329
  %v2549 = vmul.f32 %v2461, %v2461
  %v2550 = vmul.f32 %v2332, %v2332
  %v2551 = vmul.f32 %v2464, %v2464
  %v2552 = vmul.f32 %v2334, %v2334
  %v2553 = vmul.f32 %v2466, %v2466
  %v2554 = vmul.f32 %v2337, %v2337
  %v2555 = vmul.f32 %v2469, %v2469
  %v2556 = vmul.f32 %v2339, %v2339
  %v2557 = vmul.f32 %v2471, %v2471
  %v2558 = vmul.f32 %v2342, %v2342
  %v2559 = vmul.f32 %v2474, %v2474
  %v2560 = vmul.f32 %v2344, %v2344
  %v2561 = vmul.f32 %v2476, %v2476
  %v2562 = vsel %vm493, %v2535, 0.0
  %v2563 = vadd.f32 %v2534, %v2562
  %2564 = vadd.xlane.f32.xlu0 %v2563
  %v2565 = vpop.xlane.xlu0 %2564
  %v2566 = vsel %vm493, %v2537, 0.0
  %v2567 = vadd.f32 %v2536, %v2566
  %2568 = vadd.xlane.f32.xlu0 %v2567
  %v2569 = vpop.xlane.xlu0 %2568
  %v2570 = vsel %vm493, %v2539, 0.0
  %v2571 = vadd.f32 %v2538, %v2570
  %2572 = vadd.xlane.f32.xlu0 %v2571
  %v2573 = vpop.xlane.xlu0 %2572
  %v2574 = vsel %vm493, %v2541, 0.0
  %v2575 = vadd.f32 %v2540, %v2574
  %2576 = vadd.xlane.f32.xlu0 %v2575
  %v2577 = vpop.xlane.xlu0 %2576
  %v2578 = vsel %vm493, %v2543, 0.0
  %v2579 = vadd.f32 %v2542, %v2578
  %2580 = vadd.xlane.f32.xlu0 %v2579
  %v2581 = vpop.xlane.xlu0 %2580
  %v2582 = vsel %vm493, %v2545, 0.0
  %v2583 = vadd.f32 %v2544, %v2582
  %2584 = vadd.xlane.f32.xlu0 %v2583
  %v2585 = vpop.xlane.xlu0 %2584
  %v2586 = vsel %vm493, %v2547, 0.0
  %v2587 = vadd.f32 %v2546, %v2586
  %2588 = vadd.xlane.f32.xlu0 %v2587
  %v2589 = vpop.xlane.xlu0 %2588
  %v2590 = vsel %vm493, %v2549, 0.0
  %v2591 = vadd.f32 %v2548, %v2590
  %2592 = vadd.xlane.f32.xlu0 %v2591
  %v2593 = vpop.xlane.xlu0 %2592
  %v2594 = vsel %vm493, %v2551, 0.0
  %v2595 = vadd.f32 %v2550, %v2594
  %2596 = vadd.xlane.f32.xlu0 %v2595
  %v2597 = vpop.xlane.xlu0 %2596
  %v2598 = vsel %vm493, %v2553, 0.0
  %v2599 = vadd.f32 %v2552, %v2598
  %2600 = vadd.xlane.f32.xlu0 %v2599
  %v2601 = vpop.xlane.xlu0 %2600
  %v2602 = vsel %vm493, %v2555, 0.0
  %v2603 = vadd.f32 %v2554, %v2602
  %2604 = vadd.xlane.f32.xlu0 %v2603
  %v2605 = vpop.xlane.xlu0 %2604
  %v2606 = vsel %vm493, %v2557, 0.0
  %v2607 = vadd.f32 %v2556, %v2606
  %2608 = vadd.xlane.f32.xlu0 %v2607
  %v2609 = vpop.xlane.xlu0 %2608
  %v2610 = vsel %vm493, %v2559, 0.0
  %v2611 = vadd.f32 %v2558, %v2610
  %2612 = vadd.xlane.f32.xlu0 %v2611
  %v2613 = vpop.xlane.xlu0 %2612
  %v2614 = vsel %vm493, %v2561, 0.0
  %v2615 = vadd.f32 %v2560, %v2614
  %2616 = vadd.xlane.f32.xlu0 %v2615
  %v2617 = vpop.xlane.xlu0 %2616
  %v2618 = vmul.f32 %v2481, 0.0051020407
  %v2619 = vmul.f32 %v2485, 0.0051020407
  %v2620 = vmul.f32 %v2489, 0.0051020407
  %v2621 = vmul.f32 %v2493, 0.0051020407
  %v2622 = vmul.f32 %v2497, 0.0051020407
  %v2623 = vmul.f32 %v2501, 0.0051020407
  %v2624 = vmul.f32 %v2505, 0.0051020407
  %v2625 = vmul.f32 %v2509, 0.0051020407
  %v2626 = vmul.f32 %v2513, 0.0051020407
  %v2627 = vmul.f32 %v2517, 0.0051020407
  %v2628 = vmul.f32 %v2521, 0.0051020407
  %v2629 = vmul.f32 %v2525, 0.0051020407
  %v2630 = vmul.f32 %v2529, 0.0051020407
  %v2631 = vmul.f32 %v2533, 0.0051020407
  %v2632 = vmul.f32 %v2565, 0.0051020407
  %v2633 = vmul.f32 %v2569, 0.0051020407
  %v2634 = vmul.f32 %v2573, 0.0051020407
  %v2635 = vmul.f32 %v2577, 0.0051020407
  %v2636 = vmul.f32 %v2581, 0.0051020407
  %v2637 = vmul.f32 %v2585, 0.0051020407
  %v2638 = vmul.f32 %v2589, 0.0051020407
  %v2639 = vmul.f32 %v2593, 0.0051020407
  %v2640 = vmul.f32 %v2597, 0.0051020407
  %v2641 = vmul.f32 %v2601, 0.0051020407
  %v2642 = vmul.f32 %v2605, 0.0051020407
  %v2643 = vmul.f32 %v2609, 0.0051020407
  %v2644 = vmul.f32 %v2613, 0.0051020407
  %v2645 = vmul.f32 %v2617, 0.0051020407
  %v2646 = vmul.f32 %v2618, %v2618
  %v2647 = vmul.f32 %v2619, %v2619
  %v2648 = vmul.f32 %v2620, %v2620
  %v2649 = vmul.f32 %v2621, %v2621
  %v2650 = vmul.f32 %v2622, %v2622
  %v2651 = vmul.f32 %v2623, %v2623
  %v2652 = vmul.f32 %v2624, %v2624
  %v2653 = vmul.f32 %v2625, %v2625
  %v2654 = vmul.f32 %v2626, %v2626
  %v2655 = vmul.f32 %v2627, %v2627
  %v2656 = vmul.f32 %v2628, %v2628
  %v2657 = vmul.f32 %v2629, %v2629
  %v2658 = vmul.f32 %v2630, %v2630
  %v2659 = vmul.f32 %v2631, %v2631
  %v2660 = vsub.f32 %v2632, %v2646
  %v2661 = vsub.f32 %v2633, %v2647
  %v2662 = vsub.f32 %v2634, %v2648
  %v2663 = vsub.f32 %v2635, %v2649
  %v2664 = vsub.f32 %v2636, %v2650
  %v2665 = vsub.f32 %v2637, %v2651
  %v2666 = vsub.f32 %v2638, %v2652
  %v2667 = vsub.f32 %v2639, %v2653
  %v2668 = vsub.f32 %v2640, %v2654
  %v2669 = vsub.f32 %v2641, %v2655
  %v2670 = vsub.f32 %v2642, %v2656
  %v2671 = vsub.f32 %v2643, %v2657
  %v2672 = vsub.f32 %v2644, %v2658
  %v2673 = vsub.f32 %v2645, %v2659
  %v2674 = vld [vmem:[%s2 + $0xe0] sm:$0xff]
  %v2675 = vld [vmem:[%s2 + $0xe8] sm:$0xff]
  %v2676 = vld [vmem:[%s2 + $0xf0] sm:$0xff]
  %v2677 = vld [vmem:[%s2 + $0xf8] sm:$0xff]
  %v2678 = vld [vmem:[%s2 + $0x100] sm:$0xff]
  %v2679 = vld [vmem:[%s2 + $0x108] sm:$0xff]
  %v2680 = vld [vmem:[%s2 + $0x110] sm:$0xff]
  %v2681 = vld [vmem:[%s2 + $0x118] sm:$0xff]
  %v2682 = vld [vmem:[%s2 + $0x120] sm:$0xff]
  %v2683 = vld [vmem:[%s2 + $0x128] sm:$0xff]
  %v2684 = vld [vmem:[%s2 + $0x130] sm:$0xff]
  %v2685 = vld [vmem:[%s2 + $0x138] sm:$0xff]
  %v2686 = vld [vmem:[%s2 + $0x140] sm:$0xff]
  %v2687 = vld [vmem:[%s2 + $0x148] sm:$0xff]
  %v2688 = vadd.f32 %v2660, 1e-05
  %v2689 = vadd.f32 %v2661, 1e-05
  %v2690 = vadd.f32 %v2662, 1e-05
  %v2691 = vadd.f32 %v2663, 1e-05
  %v2692 = vadd.f32 %v2664, 1e-05
  %v2693 = vadd.f32 %v2665, 1e-05
  %v2694 = vadd.f32 %v2666, 1e-05
  %v2695 = vadd.f32 %v2667, 1e-05
  %v2696 = vadd.f32 %v2668, 1e-05
  %v2697 = vadd.f32 %v2669, 1e-05
  %v2698 = vadd.f32 %v2670, 1e-05
  %v2699 = vadd.f32 %v2671, 1e-05
  %v2700 = vadd.f32 %v2672, 1e-05
  %v2701 = vadd.f32 %v2673, 1e-05
  %v2702 = vrsqrt.pop %v2688
  %v2703 = vmul.f32 %v2702, %v2688
  %v2704 = vmul.f32 %v2703, %v2702
  %v2705 = vmul.f32 0.5, %v2704
  %v2706 = vsub.f32 1.5, %v2705
  %v2707 = vmul.f32 %v2702, %v2706
  %vm2708 = vweird.f32 %v2688
  %vm2709 = vweird.f32 %v2702
  %vm2710 = vmor %vm2708, %vm2709
  %v2711 = vsel %vm2710, %v2702, %v2707
  %v2712 = vrsqrt.pop %v2689
  %v2713 = vmul.f32 %v2712, %v2689
  %v2714 = vmul.f32 %v2713, %v2712
  %v2715 = vmul.f32 0.5, %v2714
  %v2716 = vsub.f32 1.5, %v2715
  %v2717 = vmul.f32 %v2712, %v2716
  %vm2718 = vweird.f32 %v2689
  %vm2719 = vweird.f32 %v2712
  %vm2720 = vmor %vm2718, %vm2719
  %v2721 = vsel %vm2720, %v2712, %v2717
  %v2722 = vrsqrt.pop %v2690
  %v2723 = vmul.f32 %v2722, %v2690
  %v2724 = vmul.f32 %v2723, %v2722
  %v2725 = vmul.f32 0.5, %v2724
  %v2726 = vsub.f32 1.5, %v2725
  %v2727 = vmul.f32 %v2722, %v2726
  %vm2728 = vweird.f32 %v2690
  %vm2729 = vweird.f32 %v2722
  %vm2730 = vmor %vm2728, %vm2729
  %v2731 = vsel %vm2730, %v2722, %v2727
  %v2732 = vrsqrt.pop %v2691
  %v2733 = vmul.f32 %v2732, %v2691
  %v2734 = vmul.f32 %v2733, %v2732
  %v2735 = vmul.f32 0.5, %v2734
  %v2736 = vsub.f32 1.5, %v2735
  %v2737 = vmul.f32 %v2732, %v2736
  %vm2738 = vweird.f32 %v2691
  %vm2739 = vweird.f32 %v2732
  %vm2740 = vmor %vm2738, %vm2739
  %v2741 = vsel %vm2740, %v2732, %v2737
  %v2742 = vrsqrt.pop %v2692
  %v2743 = vmul.f32 %v2742, %v2692
  %v2744 = vmul.f32 %v2743, %v2742
  %v2745 = vmul.f32 0.5, %v2744
  %v2746 = vsub.f32 1.5, %v2745
  %v2747 = vmul.f32 %v2742, %v2746
  %vm2748 = vweird.f32 %v2692
  %vm2749 = vweird.f32 %v2742
  %vm2750 = vmor %vm2748, %vm2749
  %v2751 = vsel %vm2750, %v2742, %v2747
  %v2752 = vrsqrt.pop %v2693
  %v2753 = vmul.f32 %v2752, %v2693
  %v2754 = vmul.f32 %v2753, %v2752
  %v2755 = vmul.f32 0.5, %v2754
  %v2756 = vsub.f32 1.5, %v2755
  %v2757 = vmul.f32 %v2752, %v2756
  %vm2758 = vweird.f32 %v2693
  %vm2759 = vweird.f32 %v2752
  %vm2760 = vmor %vm2758, %vm2759
  %v2761 = vsel %vm2760, %v2752, %v2757
  %v2762 = vrsqrt.pop %v2694
  %v2763 = vmul.f32 %v2762, %v2694
  %v2764 = vmul.f32 %v2763, %v2762
  %v2765 = vmul.f32 0.5, %v2764
  %v2766 = vsub.f32 1.5, %v2765
  %v2767 = vmul.f32 %v2762, %v2766
  %vm2768 = vweird.f32 %v2694
  %vm2769 = vweird.f32 %v2762
  %vm2770 = vmor %vm2768, %vm2769
  %v2771 = vsel %vm2770, %v2762, %v2767
  %v2772 = vrsqrt.pop %v2695
  %v2773 = vmul.f32 %v2772, %v2695
  %v2774 = vmul.f32 %v2773, %v2772
  %v2775 = vmul.f32 0.5, %v2774
  %v2776 = vsub.f32 1.5, %v2775
  %v2777 = vmul.f32 %v2772, %v2776
  %vm2778 = vweird.f32 %v2695
  %vm2779 = vweird.f32 %v2772
  %vm2780 = vmor %vm2778, %vm2779
  %v2781 = vsel %vm2780, %v2772, %v2777
  %v2782 = vrsqrt.pop %v2696
  %v2783 = vmul.f32 %v2782, %v2696
  %v2784 = vmul.f32 %v2783, %v2782
  %v2785 = vmul.f32 0.5, %v2784
  %v2786 = vsub.f32 1.5, %v2785
  %v2787 = vmul.f32 %v2782, %v2786
  %vm2788 = vweird.f32 %v2696
  %vm2789 = vweird.f32 %v2782
  %vm2790 = vmor %vm2788, %vm2789
  %v2791 = vsel %vm2790, %v2782, %v2787
  %v2792 = vrsqrt.pop %v2697
  %v2793 = vmul.f32 %v2792, %v2697
  %v2794 = vmul.f32 %v2793, %v2792
  %v2795 = vmul.f32 0.5, %v2794
  %v2796 = vsub.f32 1.5, %v2795
  %v2797 = vmul.f32 %v2792, %v2796
  %vm2798 = vweird.f32 %v2697
  %vm2799 = vweird.f32 %v2792
  %vm2800 = vmor %vm2798, %vm2799
  %v2801 = vsel %vm2800, %v2792, %v2797
  %v2802 = vrsqrt.pop %v2698
  %v2803 = vmul.f32 %v2802, %v2698
  %v2804 = vmul.f32 %v2803, %v2802
  %v2805 = vmul.f32 0.5, %v2804
  %v2806 = vsub.f32 1.5, %v2805
  %v2807 = vmul.f32 %v2802, %v2806
  %vm2808 = vweird.f32 %v2698
  %vm2809 = vweird.f32 %v2802
  %vm2810 = vmor %vm2808, %vm2809
  %v2811 = vsel %vm2810, %v2802, %v2807
  %v2812 = vrsqrt.pop %v2699
  %v2813 = vmul.f32 %v2812, %v2699
  %v2814 = vmul.f32 %v2813, %v2812
  %v2815 = vmul.f32 0.5, %v2814
  %v2816 = vsub.f32 1.5, %v2815
  %v2817 = vmul.f32 %v2812, %v2816
  %vm2818 = vweird.f32 %v2699
  %vm2819 = vweird.f32 %v2812
  %vm2820 = vmor %vm2818, %vm2819
  %v2821 = vsel %vm2820, %v2812, %v2817
  %v2822 = vrsqrt.pop %v2700
  %v2823 = vmul.f32 %v2822, %v2700
  %v2824 = vmul.f32 %v2823, %v2822
  %v2825 = vmul.f32 0.5, %v2824
  %v2826 = vsub.f32 1.5, %v2825
  %v2827 = vmul.f32 %v2822, %v2826
  %vm2828 = vweird.f32 %v2700
  %vm2829 = vweird.f32 %v2822
  %vm2830 = vmor %vm2828, %vm2829
  %v2831 = vsel %vm2830, %v2822, %v2827
  %v2832 = vrsqrt.pop %v2701
  %v2833 = vmul.f32 %v2832, %v2701
  %v2834 = vmul.f32 %v2833, %v2832
  %v2835 = vmul.f32 0.5, %v2834
  %v2836 = vsub.f32 1.5, %v2835
  %v2837 = vmul.f32 %v2832, %v2836
  %vm2838 = vweird.f32 %v2701
  %vm2839 = vweird.f32 %v2832
  %vm2840 = vmor %vm2838, %vm2839
  %v2841 = vsel %vm2840, %v2832, %v2837
  %v2842 = vmul.f32 %v2674, %v2711
  %v2843 = vmul.f32 %v2675, %v2721
  %v2844 = vmul.f32 %v2676, %v2731
  %v2845 = vmul.f32 %v2677, %v2741
  %v2846 = vmul.f32 %v2678, %v2751
  %v2847 = vmul.f32 %v2679, %v2761
  %v2848 = vmul.f32 %v2680, %v2771
  %v2849 = vmul.f32 %v2681, %v2781
  %v2850 = vmul.f32 %v2682, %v2791
  %v2851 = vmul.f32 %v2683, %v2801
  %v2852 = vmul.f32 %v2684, %v2811
  %v2853 = vmul.f32 %v2685, %v2821
  %v2854 = vmul.f32 %v2686, %v2831
  %v2855 = vmul.f32 %v2687, %v2841
  %v2856 = vld [vmem:[%s3 + $0xe0] sm:$0xff]
  %v2857 = vld [vmem:[%s3 + $0xe8] sm:$0xff]
  %v2858 = vld [vmem:[%s3 + $0xf0] sm:$0xff]
  %v2859 = vld [vmem:[%s3 + $0xf8] sm:$0xff]
  %v2860 = vld [vmem:[%s3 + $0x100] sm:$0xff]
  %v2861 = vld [vmem:[%s3 + $0x108] sm:$0xff]
  %v2862 = vld [vmem:[%s3 + $0x110] sm:$0xff]
  %v2863 = vld [vmem:[%s3 + $0x118] sm:$0xff]
  %v2864 = vld [vmem:[%s3 + $0x120] sm:$0xff]
  %v2865 = vld [vmem:[%s3 + $0x128] sm:$0xff]
  %v2866 = vld [vmem:[%s3 + $0x130] sm:$0xff]
  %v2867 = vld [vmem:[%s3 + $0x138] sm:$0xff]
  %v2868 = vld [vmem:[%s3 + $0x140] sm:$0xff]
  %v2869 = vld [vmem:[%s3 + $0x148] sm:$0xff]
  %v2870 = vmul.f32 %v2618, %v2842
  %v2871 = vmul.f32 %v2619, %v2843
  %v2872 = vmul.f32 %v2620, %v2844
  %v2873 = vmul.f32 %v2621, %v2845
  %v2874 = vmul.f32 %v2622, %v2846
  %v2875 = vmul.f32 %v2623, %v2847
  %v2876 = vmul.f32 %v2624, %v2848
  %v2877 = vmul.f32 %v2625, %v2849
  %v2878 = vmul.f32 %v2626, %v2850
  %v2879 = vmul.f32 %v2627, %v2851
  %v2880 = vmul.f32 %v2628, %v2852
  %v2881 = vmul.f32 %v2629, %v2853
  %v2882 = vmul.f32 %v2630, %v2854
  %v2883 = vmul.f32 %v2631, %v2855
  %v2884 = vsub.f32 %v2856, %v2870
  %v2885 = vsub.f32 %v2857, %v2871
  %v2886 = vsub.f32 %v2858, %v2872
  %v2887 = vsub.f32 %v2859, %v2873
  %v2888 = vsub.f32 %v2860, %v2874
  %v2889 = vsub.f32 %v2861, %v2875
  %v2890 = vsub.f32 %v2862, %v2876
  %v2891 = vsub.f32 %v2863, %v2877
  %v2892 = vsub.f32 %v2864, %v2878
  %v2893 = vsub.f32 %v2865, %v2879
  %v2894 = vsub.f32 %v2866, %v2880
  %v2895 = vsub.f32 %v2867, %v2881
  %v2896 = vsub.f32 %v2868, %v2882
  %v2897 = vsub.f32 %v2869, %v2883
  %2899 = vset.pattern.permute.xlu0 0
  %2900 = vperm.xlu0 %2899, %v2842
  %v2901 = vpop.permute.xlu0 %2900
  %2904 = vset.pattern.permute.xlu0 0
  %2905 = vperm.xlu0 %2904, %v2843
  %v2906 = vpop.permute.xlu0 %2905
  %2909 = vset.pattern.permute.xlu0 0
  %2910 = vperm.xlu0 %2909, %v2844
  %v2911 = vpop.permute.xlu0 %2910
  %2914 = vset.pattern.permute.xlu0 0
  %2915 = vperm.xlu0 %2914, %v2845
  %v2916 = vpop.permute.xlu0 %2915
  %2919 = vset.pattern.permute.xlu0 0
  %2920 = vperm.xlu0 %2919, %v2846
  %v2921 = vpop.permute.xlu0 %2920
  %2924 = vset.pattern.permute.xlu0 0
  %2925 = vperm.xlu0 %2924, %v2847
  %v2926 = vpop.permute.xlu0 %2925
  %2929 = vset.pattern.permute.xlu0 0
  %2930 = vperm.xlu0 %2929, %v2848
  %v2931 = vpop.permute.xlu0 %2930
  %2934 = vset.pattern.permute.xlu0 0
  %2935 = vperm.xlu0 %2934, %v2849
  %v2936 = vpop.permute.xlu0 %2935
  %2939 = vset.pattern.permute.xlu0 0
  %2940 = vperm.xlu0 %2939, %v2850
  %v2941 = vpop.permute.xlu0 %2940
  %2944 = vset.pattern.permute.xlu0 0
  %2945 = vperm.xlu0 %2944, %v2851
  %v2946 = vpop.permute.xlu0 %2945
  %2949 = vset.pattern.permute.xlu0 0
  %2950 = vperm.xlu0 %2949, %v2852
  %v2951 = vpop.permute.xlu0 %2950
  %2954 = vset.pattern.permute.xlu0 0
  %2955 = vperm.xlu0 %2954, %v2853
  %v2956 = vpop.permute.xlu0 %2955
  %2959 = vset.pattern.permute.xlu0 0
  %2960 = vperm.xlu0 %2959, %v2854
  %v2961 = vpop.permute.xlu0 %2960
  %2964 = vset.pattern.permute.xlu0 0
  %2965 = vperm.xlu0 %2964, %v2855
  %v2966 = vpop.permute.xlu0 %2965
  %v2968 = vmul.f32 %v2312, %v2901
  %v2969 = vmul.f32 %v2444, %v2901
  %v2970 = vmul.f32 %v2314, %v2906
  %v2971 = vmul.f32 %v2446, %v2906
  %v2972 = vmul.f32 %v2317, %v2911
  %v2973 = vmul.f32 %v2449, %v2911
  %v2974 = vmul.f32 %v2319, %v2916
  %v2975 = vmul.f32 %v2451, %v2916
  %v2976 = vmul.f32 %v2322, %v2921
  %v2977 = vmul.f32 %v2454, %v2921
  %v2978 = vmul.f32 %v2324, %v2926
  %v2979 = vmul.f32 %v2456, %v2926
  %v2980 = vmul.f32 %v2327, %v2931
  %v2981 = vmul.f32 %v2459, %v2931
  %v2982 = vmul.f32 %v2329, %v2936
  %v2983 = vmul.f32 %v2461, %v2936
  %v2984 = vmul.f32 %v2332, %v2941
  %v2985 = vmul.f32 %v2464, %v2941
  %v2986 = vmul.f32 %v2334, %v2946
  %v2987 = vmul.f32 %v2466, %v2946
  %v2988 = vmul.f32 %v2337, %v2951
  %v2989 = vmul.f32 %v2469, %v2951
  %v2990 = vmul.f32 %v2339, %v2956
  %v2991 = vmul.f32 %v2471, %v2956
  %v2992 = vmul.f32 %v2342, %v2961
  %v2993 = vmul.f32 %v2474, %v2961
  %v2994 = vmul.f32 %v2344, %v2966
  %v2995 = vmul.f32 %v2476, %v2966
  %2997 = vset.pattern.permute.xlu0 0
  %2998 = vperm.xlu0 %2997, %v2884
  %v2999 = vpop.permute.xlu0 %2998
  %3002 = vset.pattern.permute.xlu0 0
  %3003 = vperm.xlu0 %3002, %v2885
  %v3004 = vpop.permute.xlu0 %3003
  %3007 = vset.pattern.permute.xlu0 0
  %3008 = vperm.xlu0 %3007, %v2886
  %v3009 = vpop.permute.xlu0 %3008
  %3012 = vset.pattern.permute.xlu0 0
  %3013 = vperm.xlu0 %3012, %v2887
  %v3014 = vpop.permute.xlu0 %3013
  %3017 = vset.pattern.permute.xlu0 0
  %3018 = vperm.xlu0 %3017, %v2888
  %v3019 = vpop.permute.xlu0 %3018
  %3022 = vset.pattern.permute.xlu0 0
  %3023 = vperm.xlu0 %3022, %v2889
  %v3024 = vpop.permute.xlu0 %3023
  %3027 = vset.pattern.permute.xlu0 0
  %3028 = vperm.xlu0 %3027, %v2890
  %v3029 = vpop.permute.xlu0 %3028
  %3032 = vset.pattern.permute.xlu0 0
  %3033 = vperm.xlu0 %3032, %v2891
  %v3034 = vpop.permute.xlu0 %3033
  %3037 = vset.pattern.permute.xlu0 0
  %3038 = vperm.xlu0 %3037, %v2892
  %v3039 = vpop.permute.xlu0 %3038
  %3042 = vset.pattern.permute.xlu0 0
  %3043 = vperm.xlu0 %3042, %v2893
  %v3044 = vpop.permute.xlu0 %3043
  %3047 = vset.pattern.permute.xlu0 0
  %3048 = vperm.xlu0 %3047, %v2894
  %v3049 = vpop.permute.xlu0 %3048
  %3052 = vset.pattern.permute.xlu0 0
  %3053 = vperm.xlu0 %3052, %v2895
  %v3054 = vpop.permute.xlu0 %3053
  %3057 = vset.pattern.permute.xlu0 0
  %3058 = vperm.xlu0 %3057, %v2896
  %v3059 = vpop.permute.xlu0 %3058
  %3062 = vset.pattern.permute.xlu0 0
  %3063 = vperm.xlu0 %3062, %v2897
  %v3064 = vpop.permute.xlu0 %3063
  %v3066 = vadd.f32 %v2968, %v2999
  %v3067 = vadd.f32 %v2969, %v2999
  %v3068 = vadd.f32 %v2970, %v3004
  %v3069 = vadd.f32 %v2971, %v3004
  %v3070 = vadd.f32 %v2972, %v3009
  %v3071 = vadd.f32 %v2973, %v3009
  %v3072 = vadd.f32 %v2974, %v3014
  %v3073 = vadd.f32 %v2975, %v3014
  %v3074 = vadd.f32 %v2976, %v3019
  %v3075 = vadd.f32 %v2977, %v3019
  %v3076 = vadd.f32 %v2978, %v3024
  %v3077 = vadd.f32 %v2979, %v3024
  %v3078 = vadd.f32 %v2980, %v3029
  %v3079 = vadd.f32 %v2981, %v3029
  %v3080 = vadd.f32 %v2982, %v3034
  %v3081 = vadd.f32 %v2983, %v3034
  %v3082 = vadd.f32 %v2984, %v3039
  %v3083 = vadd.f32 %v2985, %v3039
  %v3084 = vadd.f32 %v2986, %v3044
  %v3085 = vadd.f32 %v2987, %v3044
  %v3086 = vadd.f32 %v2988, %v3049
  %v3087 = vadd.f32 %v2989, %v3049
  %v3088 = vadd.f32 %v2990, %v3054
  %v3089 = vadd.f32 %v2991, %v3054
  %v3090 = vadd.f32 %v2992, %v3059
  %v3091 = vadd.f32 %v2993, %v3059
  %v3092 = vadd.f32 %v2994, %v3064
  %v3093 = vadd.f32 %v2995, %v3064
  %3094 = vst [vmem:[%s4 + $0x1c0] sm:$0xff] %v3066
  %3095 = vst.msk [vmem:[%s4 + $0x1c8] sm:$0xff] %vm493, %v3067
  %3096 = vst [vmem:[%s4 + $0x1d0] sm:$0xff] %v3068
  %3097 = vst.msk [vmem:[%s4 + $0x1d8] sm:$0xff] %vm493, %v3069
  %3098 = vst [vmem:[%s4 + $0x1e0] sm:$0xff] %v3070
  %3099 = vst.msk [vmem:[%s4 + $0x1e8] sm:$0xff] %vm493, %v3071
  %3100 = vst [vmem:[%s4 + $0x1f0] sm:$0xff] %v3072
  %3101 = vst.msk [vmem:[%s4 + $0x1f8] sm:$0xff] %vm493, %v3073
  %3102 = vst [vmem:[%s4 + $0x200] sm:$0xff] %v3074
  %3103 = vst.msk [vmem:[%s4 + $0x208] sm:$0xff] %vm493, %v3075
  %3104 = vst [vmem:[%s4 + $0x210] sm:$0xff] %v3076
  %3105 = vst.msk [vmem:[%s4 + $0x218] sm:$0xff] %vm493, %v3077
  %3106 = vst [vmem:[%s4 + $0x220] sm:$0xff] %v3078
  %3107 = vst.msk [vmem:[%s4 + $0x228] sm:$0xff] %vm493, %v3079
  %3108 = vst [vmem:[%s4 + $0x230] sm:$0xff] %v3080
  %3109 = vst.msk [vmem:[%s4 + $0x238] sm:$0xff] %vm493, %v3081
  %3110 = vst [vmem:[%s4 + $0x240] sm:$0xff] %v3082
  %3111 = vst.msk [vmem:[%s4 + $0x248] sm:$0xff] %vm493, %v3083
  %3112 = vst [vmem:[%s4 + $0x250] sm:$0xff] %v3084
  %3113 = vst.msk [vmem:[%s4 + $0x258] sm:$0xff] %vm493, %v3085
  %3114 = vst [vmem:[%s4 + $0x260] sm:$0xff] %v3086
  %3115 = vst.msk [vmem:[%s4 + $0x268] sm:$0xff] %vm493, %v3087
  %3116 = vst [vmem:[%s4 + $0x270] sm:$0xff] %v3088
  %3117 = vst.msk [vmem:[%s4 + $0x278] sm:$0xff] %vm493, %v3089
  %3118 = vst [vmem:[%s4 + $0x280] sm:$0xff] %v3090
  %3119 = vst.msk [vmem:[%s4 + $0x288] sm:$0xff] %vm493, %v3091
  %3120 = vst [vmem:[%s4 + $0x290] sm:$0xff] %v3092
  %3121 = vst.msk [vmem:[%s4 + $0x298] sm:$0xff] %vm493, %v3093
  // Predicated region
  $region18: #{conv2d_1x1_batchnorm.1} parent=0 // pred_check
    _
  $region19: #{conv2d_1x1_batchnorm.1} parent=0 // pred_check_branch
    %3123 = sbr.rel (0) target = $region21
  $region20: #{conv2d_1x1_batchnorm.1} parent=0 // pred_region
    _
  $region21: #{conv2d_1x1_batchnorm.1} parent=0 // pred_fallthru
    _
  // Predicated region
  $region22: #{conv2d_1x1_batchnorm.1} parent=0 // pred_check
    _
  $region23: #{conv2d_1x1_batchnorm.1} parent=0 // pred_check_branch
    %3125 = sbr.rel (0) target = $region25
  $region24: #{conv2d_1x1_batchnorm.1} parent=0 // pred_region
    _
  $region25: #{conv2d_1x1_batchnorm.1} parent=0 // pred_fallthru
    _

</llo_original>
